<compile_context>
chip_gen: v5e
topology: v5e:2x2
jax: 0.10.0
libtpu: 0.0.40
codegen_flags: <defaults>
</compile_context>

<pallas_src>
import jax
import jax.numpy as jnp
from jax.experimental import pallas as pl
from jax.experimental.pallas import tpu as pltpu

VIRTUAL_BOND_FEATURE_PLACEHOLDER = -1  # sentinel used by PerioGT for virtual bonds


def bond_embedding_kernel(edge_ref, ind_ref, w_ref, bv_ref, out_ref):
    # Linear: x @ W^T + b, accumulated in f32.
    x = edge_ref[...]                                   # (tile_n, d_bond)
    w = w_ref[...]                                      # (d_bond, d_g), resident
    h = jnp.dot(x, w, preferred_element_type=jnp.float32)

    bv = bv_ref[...]                                    # (2, d_g): row0 = bias, row1 = virtual emb
    h = h + bv[0:1, :]

    # Rows flagged as virtual bonds take the virtual-bond embedding instead.
    mask = ind_ref[...] == VIRTUAL_BOND_FEATURE_PLACEHOLDER   # (tile_n, 1) bool
    h = jnp.where(mask, bv[1:2, :], h)

    # Dropout: module exercised in eval/inference mode -> identity.
    # TODO(synk): training-mode dropout (pltpu.prng_random_bits mask) not emitted.
    out_ref[...] = h.astype(out_ref.dtype)


def bond_embedding(edge_feats, indicators, w_t, bias, virt_emb, *,
                   tile_n=1024, out_dtype=None):
    """edge_feats: [N, d_bond] f32, indicators: [N] int,
       w_t: [d_bond, d_g] f32 (transpose of the nn.Linear weight),
       bias: [d_g] f32, virt_emb: [1, d_g] f32."""
    N, d_bond = edge_feats.shape
    d_g = w_t.shape[1]
    if out_dtype is None:
        out_dtype = edge_feats.dtype

    # Clamp the tile to the sublane-aligned problem size so tiny inputs don't
    # allocate oversized blocks; keep it a multiple of 8 for a legal block shape.
    tile = max(8, min(tile_n, ((N + 7) // 8) * 8))
    grid = (pl.cdiv(N, tile),)

    ind2d = indicators.reshape(N, 1).astype(jnp.int32)
    # Fold bias + virtual-bond embedding into a single resident (2, d_g) operand.
    bv = jnp.concatenate(
        [bias.reshape(1, d_g).astype(jnp.float32),
         virt_emb.reshape(1, d_g).astype(jnp.float32)], axis=0)

    return pl.pallas_call(
        bond_embedding_kernel,
        out_shape=jax.ShapeDtypeStruct((N, d_g), out_dtype),
        grid_spec=pltpu.PrefetchScalarGridSpec(
            num_scalar_prefetch=0,
            grid=grid,
            in_specs=[
                pl.BlockSpec((tile, d_bond), lambda i: (i, 0)),   # edge_feats tile
                pl.BlockSpec((tile, 1), lambda i: (i, 0)),        # indicators tile
                pl.BlockSpec((d_bond, d_g), lambda i: (0, 0)),    # W^T (resident)
                pl.BlockSpec((2, d_g), lambda i: (0, 0)),         # bias + virtual emb
            ],
            out_specs=pl.BlockSpec((tile, d_g), lambda i: (i, 0)),
        ),
        compiler_params=pltpu.CompilerParams(
            # Shards the edge axis across TensorCores on multi-TC parts (v7x).
            dimension_semantics=("parallel",),
        ),
    )(edge_feats, ind2d, w_t, bv)


def reference(edge_feats, indicators, w_t, bias, virt_emb):
    h = edge_feats @ w_t + bias[None, :]
    mask = (indicators == VIRTUAL_BOND_FEATURE_PLACEHOLDER)[:, None]
    return jnp.where(mask, virt_emb, h)


if __name__ == "__main__":
    key = jax.random.PRNGKey(0)
    k1, k2, k3, k4, k5 = jax.random.split(key, 5)

    # Small but representative: N is NOT a multiple of tile_n (exercises the
    # cdiv tail + Pallas masking), d_g is lane-dense (multiple of 128).
    N = 1000           # number of edges
    d_bond = 16        # d_bond_feats
    d_g = 128          # d_g_feats

    edge_feats = jax.random.normal(k1, (N, d_bond), dtype=jnp.float32)
    # Deterministic synthetic parameters (not a checkpoint load).
    w_t = jax.random.normal(k2, (d_bond, d_g), dtype=jnp.float32) * 0.05
    bias = jax.random.normal(k3, (d_g,), dtype=jnp.float32) * 0.01
    virt_emb = jax.random.normal(k4, (1, d_g), dtype=jnp.float32)

    # ~25% of edges marked as virtual bonds.
    indicators = jnp.where(
        jax.random.uniform(k5, (N,)) < 0.25,
        jnp.int32(VIRTUAL_BOND_FEATURE_PLACEHOLDER),
        jnp.int32(0),
    )

    out = bond_embedding(edge_feats, indicators, w_t, bias, virt_emb)
    out = jax.block_until_ready(out)

    ref = reference(edge_feats, indicators, w_t, bias, virt_emb)
    assert out.shape == (N, d_g)
    assert out.dtype == jnp.float32
    assert jnp.allclose(out, ref, atol=1e-3, rtol=1e-3), "mismatch vs reference"

    # Optional bf16-output path (halves HBM write traffic); looser tolerance.
    out_bf16 = jax.block_until_ready(
        bond_embedding(edge_feats, indicators, w_t, bias, virt_emb,
                       out_dtype=jnp.bfloat16))
    assert out_bf16.dtype == jnp.bfloat16
    assert jnp.allclose(out_bf16.astype(jnp.float32), ref, atol=2e-2, rtol=2e-2), \
        "bf16 path mismatch vs reference"

    print("KERNEL_OK")
</pallas_src>

<mosaic_0001>
module attributes {stable_mosaic.version = 11 : i64} {
  func.func @bond_embedding_kernel(%arg0: i32, %arg1: memref<1000x16xf32, #tpu.memory_space<vmem>>, %arg2: memref<1000x1xi32, #tpu.memory_space<vmem>>, %arg3: memref<16x128xf32, #tpu.memory_space<vmem>>, %arg4: memref<2x128xf32, #tpu.memory_space<vmem>>, %arg5: memref<1000x128xf32, #tpu.memory_space<vmem>>) attributes {dimension_semantics = [#tpu.dimension_semantics<parallel>], iteration_bounds = array<i64: 1>, scalar_prefetch = 0 : i64, scratch_operands = 0 : i64, tpu.core_type = #tpu.core_type<tc>, window_params = [{transform_indices = @transform_0, window_bounds = array<i64: 1000, 16>}, {transform_indices = @transform_1, window_bounds = array<i64: 1000, 1>}, {pipeline_mode = #tpu.pipeline_mode<synchronous>, transform_indices = @transform_2, window_bounds = array<i64: 16, 128>}, {pipeline_mode = #tpu.pipeline_mode<synchronous>, transform_indices = @transform_3, window_bounds = array<i64: 2, 128>}, {transform_indices = @transform_4, window_bounds = array<i64: 1000, 128>}]} {
    %c0 = arith.constant 0 : index
    %c0_0 = arith.constant 0 : index
    %0 = vector.load %arg1[%c0, %c0_0] : memref<1000x16xf32, #tpu.memory_space<vmem>>, vector<1000x16xf32>
    %c0_1 = arith.constant 0 : index
    %c0_2 = arith.constant 0 : index
    %1 = vector.load %arg3[%c0_1, %c0_2] : memref<16x128xf32, #tpu.memory_space<vmem>>, vector<16x128xf32>
    %cst = arith.constant dense<0.000000e+00> : vector<1000x128xf32>
    %2 = tpu.matmul %0, %1, %cst {dimension_numbers = #tpu.dot_dimension_numbers<[1], [0], [0], [1], [0, 0, 1, 1], [], []>} : vector<1000x16xf32>, vector<16x128xf32>, vector<1000x128xf32> -> vector<1000x128xf32>
    %c0_3 = arith.constant 0 : index
    %c0_4 = arith.constant 0 : index
    %3 = vector.load %arg4[%c0_3, %c0_4] : memref<2x128xf32, #tpu.memory_space<vmem>>, vector<2x128xf32>
    %4 = vector.extract_strided_slice %3 {offsets = [0, 0], sizes = [1, 128], strides = [1, 1]} : vector<2x128xf32> to vector<1x128xf32>
    %5 = vector.broadcast %4 : vector<1x128xf32> to vector<1000x128xf32>
    %6 = arith.addf %2, %5 : vector<1000x128xf32>
    %c0_5 = arith.constant 0 : index
    %c0_6 = arith.constant 0 : index
    %7 = vector.load %arg2[%c0_5, %c0_6] : memref<1000x1xi32, #tpu.memory_space<vmem>>, vector<1000x1xi32>
    %c-1_i32 = arith.constant -1 : i32
    %8 = vector.broadcast %c-1_i32 : i32 to vector<1000x1xi32>
    %9 = arith.cmpi eq, %7, %8 : vector<1000x1xi32>
    %10 = vector.extract_strided_slice %3 {offsets = [1, 0], sizes = [1, 128], strides = [1, 1]} : vector<2x128xf32> to vector<1x128xf32>
    %11 = vector.shape_cast %9 : vector<1000x1xi1> to vector<1000x1xi1>
    %12 = vector.broadcast %11 : vector<1000x1xi1> to vector<1000x128xi1>
    %13 = vector.shape_cast %10 : vector<1x128xf32> to vector<1x128xf32>
    %14 = vector.broadcast %13 : vector<1x128xf32> to vector<1000x128xf32>
    %15 = arith.select %12, %14, %6 : vector<1000x128xi1>, vector<1000x128xf32>
    %c0_7 = arith.constant 0 : index
    %c0_8 = arith.constant 0 : index
    %16 = vector.load %arg5[%c0_7, %c0_8] : memref<1000x128xf32, #tpu.memory_space<vmem>>, vector<1000x128xf32>
    tpu.vector_store %arg5[%c0_7, %c0_8], %15 {strides = array<i32>} : memref<1000x128xf32, #tpu.memory_space<vmem>>, vector<1000x128xf32>,
    return
  }
  func.func @transform_0(%arg0: i32) -> (i32, i32) {
    %c0_i32 = arith.constant 0 : i32
    %c0_i32_0 = arith.constant 0 : i32
    return %arg0, %c0_i32 : i32, i32
  }
  func.func @transform_1(%arg0: i32) -> (i32, i32) {
    %c0_i32 = arith.constant 0 : i32
    %c0_i32_0 = arith.constant 0 : i32
    return %arg0, %c0_i32 : i32, i32
  }
  func.func @transform_2(%arg0: i32) -> (i32, i32) {
    %c0_i32 = arith.constant 0 : i32
    %c0_i32_0 = arith.constant 0 : i32
    %c0_i32_1 = arith.constant 0 : i32
    return %c0_i32, %c0_i32_0 : i32, i32
  }
  func.func @transform_3(%arg0: i32) -> (i32, i32) {
    %c0_i32 = arith.constant 0 : i32
    %c0_i32_0 = arith.constant 0 : i32
    %c0_i32_1 = arith.constant 0 : i32
    return %c0_i32, %c0_i32_0 : i32, i32
  }
  func.func @transform_4(%arg0: i32) -> (i32, i32) {
    %c0_i32 = arith.constant 0 : i32
    %c0_i32_0 = arith.constant 0 : i32
    return %arg0, %c0_i32 : i32, i32
  }
}

</mosaic_0001>

<llo_original>
// kernel: tpu_custom_call.1
$region0: #{tpu_custom_call.1}
  #allocation0 [shape = 'u32[]', space=smem, size = 0x4, offset = 0x4, fixed_abs, tag = 'smem constant byte address 0x4 - core index']
  #allocation1 [shape = 'u32[72,128]{1,0:T(1,128)}', space=vmem, size = 0x9000, scoped, tag = 'internal scratch']
  %s0 = inlined_call_operand.vmem [shape: f32[1000,16], index: 0, kind: input, shape index: {}]
  %s1 = inlined_call_operand.vmem [shape: s32[1000,1], index: 1, kind: input, shape index: {}]
  %s2 = inlined_call_operand.vmem [shape: f32[16,128], index: 2, kind: input, shape index: {}]
  %s3 = inlined_call_operand.vmem [shape: f32[2,128], index: 3, kind: input, shape index: {}]
  %s4 = inlined_call_operand.hbm [shape: f32[1000,128], index: 4, kind: output, shape index: {}]
  %s5 = sld [smem:[#allocation0]]
  $region26: #{tpu_custom_call.1} parent=0
    _
  %s7 = ssub.s32 1, %s5
  %s8 = scalar_select 0, %s7, %s5
  $region1: #{tpu_custom_call.1} parent=0
    #allocation2 [shape = 'u8[512000]{0}', space=vmem, size = 0x7d000, scoped, tag = 'output window, operand 0, single buffered']
    #allocation3 [shape = 's32[1]{0}', space=sflag, size = 0x4, scoped, tag = 'scoped memory for tpu_custom_call.1']
    %9 = vsyncpa [#allocation3], 0
    // Predicated region
    $region2: #{tpu_custom_call.1} parent=1 // pred_check
      _
    $region3: #{tpu_custom_call.1} parent=1 // pred_check_branch
      %11 = sbr.rel (0) target = $region5
    $region4: #{tpu_custom_call.1} parent=1 // pred_region
      _
    $region5: #{tpu_custom_call.1} parent=1 // pred_fallthru
      _
    // Predicated region
    $region6: #{tpu_custom_call.1} parent=1 // pred_check
      _
    $region7: #{tpu_custom_call.1} parent=1 // pred_check_branch
      %13 = sbr.rel (0) target = $region9
    $region8: #{tpu_custom_call.1} parent=1 // pred_region
      _
    $region9: #{tpu_custom_call.1} parent=1 // pred_fallthru
      _
    // Predicated region
    $region10: #{tpu_custom_call.1} parent=1 // pred_check
      _
    $region11: #{tpu_custom_call.1} parent=1 // pred_check_branch
      %15 = sbr.rel (0) target = $region13
    $region12: #{tpu_custom_call.1} parent=1 // pred_region
      _
    $region13: #{tpu_custom_call.1} parent=1 // pred_fallthru
      _
    // Predicated region
    $region14: #{tpu_custom_call.1} parent=1 // pred_check
      _
    $region15: #{tpu_custom_call.1} parent=1 // pred_check_branch
      %17 = sbr.rel (0) target = $region17
    $region16: #{tpu_custom_call.1} parent=1 // pred_region
      _
    $region17: #{tpu_custom_call.1} parent=1 // pred_fallthru
      _
    %v18 = vld [vmem:[%s0] sm:$0xff]
    %v19 = vld [vmem:[%s0 + $0x8] sm:$0xff]
    %v20 = vld [vmem:[%s0 + $0x10] sm:$0xff]
    %v21 = vld [vmem:[%s0 + $0x18] sm:$0xff]
    %v22 = vld [vmem:[%s0 + $0x20] sm:$0xff]
    %v23 = vld [vmem:[%s0 + $0x28] sm:$0xff]
    %v24 = vld [vmem:[%s0 + $0x30] sm:$0xff]
    %v25 = vld [vmem:[%s0 + $0x38] sm:$0xff]
    %v26 = vld [vmem:[%s0 + $0x40] sm:$0xff]
    %v27 = vld [vmem:[%s0 + $0x48] sm:$0xff]
    %v28 = vld [vmem:[%s0 + $0x50] sm:$0xff]
    %v29 = vld [vmem:[%s0 + $0x58] sm:$0xff]
    %v30 = vld [vmem:[%s0 + $0x60] sm:$0xff]
    %v31 = vld [vmem:[%s0 + $0x68] sm:$0xff]
    %v32 = vld [vmem:[%s0 + $0x70] sm:$0xff]
    %v33 = vld [vmem:[%s0 + $0x78] sm:$0xff]
    %v34 = vld [vmem:[%s0 + $0x80] sm:$0xff]
    %v35 = vld [vmem:[%s0 + $0x88] sm:$0xff]
    %v36 = vld [vmem:[%s0 + $0x90] sm:$0xff]
    %v37 = vld [vmem:[%s0 + $0x98] sm:$0xff]
    %v38 = vld [vmem:[%s0 + $0xa0] sm:$0xff]
    %v39 = vld [vmem:[%s0 + $0xa8] sm:$0xff]
    %v40 = vld [vmem:[%s0 + $0xb0] sm:$0xff]
    %v41 = vld [vmem:[%s0 + $0xb8] sm:$0xff]
    %v42 = vld [vmem:[%s0 + $0xc0] sm:$0xff]
    %v43 = vld [vmem:[%s0 + $0xc8] sm:$0xff]
    %v44 = vld [vmem:[%s0 + $0xd0] sm:$0xff]
    %v45 = vld [vmem:[%s0 + $0xd8] sm:$0xff]
    %v46 = vld [vmem:[%s0 + $0xe0] sm:$0xff]
    %v47 = vld [vmem:[%s0 + $0xe8] sm:$0xff]
    %v48 = vld [vmem:[%s0 + $0xf0] sm:$0xff]
    %v49 = vld [vmem:[%s0 + $0xf8] sm:$0xff]
    %v50 = vld [vmem:[%s0 + $0x100] sm:$0xff]
    %v51 = vld [vmem:[%s0 + $0x108] sm:$0xff]
    %v52 = vld [vmem:[%s0 + $0x110] sm:$0xff]
    %v53 = vld [vmem:[%s0 + $0x118] sm:$0xff]
    %v54 = vld [vmem:[%s0 + $0x120] sm:$0xff]
    %v55 = vld [vmem:[%s0 + $0x128] sm:$0xff]
    %v56 = vld [vmem:[%s0 + $0x130] sm:$0xff]
    %v57 = vld [vmem:[%s0 + $0x138] sm:$0xff]
    %v58 = vld [vmem:[%s0 + $0x140] sm:$0xff]
    %v59 = vld [vmem:[%s0 + $0x148] sm:$0xff]
    %v60 = vld [vmem:[%s0 + $0x150] sm:$0xff]
    %v61 = vld [vmem:[%s0 + $0x158] sm:$0xff]
    %v62 = vld [vmem:[%s0 + $0x160] sm:$0xff]
    %v63 = vld [vmem:[%s0 + $0x168] sm:$0xff]
    %v64 = vld [vmem:[%s0 + $0x170] sm:$0xff]
    %v65 = vld [vmem:[%s0 + $0x178] sm:$0xff]
    %v66 = vld [vmem:[%s0 + $0x180] sm:$0xff]
    %v67 = vld [vmem:[%s0 + $0x188] sm:$0xff]
    %v68 = vld [vmem:[%s0 + $0x190] sm:$0xff]
    %v69 = vld [vmem:[%s0 + $0x198] sm:$0xff]
    %v70 = vld [vmem:[%s0 + $0x1a0] sm:$0xff]
    %v71 = vld [vmem:[%s0 + $0x1a8] sm:$0xff]
    %v72 = vld [vmem:[%s0 + $0x1b0] sm:$0xff]
    %v73 = vld [vmem:[%s0 + $0x1b8] sm:$0xff]
    %v74 = vld [vmem:[%s0 + $0x1c0] sm:$0xff]
    %v75 = vld [vmem:[%s0 + $0x1c8] sm:$0xff]
    %v76 = vld [vmem:[%s0 + $0x1d0] sm:$0xff]
    %v77 = vld [vmem:[%s0 + $0x1d8] sm:$0xff]
    %v78 = vld [vmem:[%s0 + $0x1e0] sm:$0xff]
    %v79 = vld [vmem:[%s0 + $0x1e8] sm:$0xff]
    %v80 = vld [vmem:[%s0 + $0x1f0] sm:$0xff]
    %v81 = vld [vmem:[%s0 + $0x1f8] sm:$0xff]
    %v82 = vld [vmem:[%s0 + $0x200] sm:$0xff]
    %v83 = vld [vmem:[%s0 + $0x208] sm:$0xff]
    %v84 = vld [vmem:[%s0 + $0x210] sm:$0xff]
    %v85 = vld [vmem:[%s0 + $0x218] sm:$0xff]
    %v86 = vld [vmem:[%s0 + $0x220] sm:$0xff]
    %v87 = vld [vmem:[%s0 + $0x228] sm:$0xff]
    %v88 = vld [vmem:[%s0 + $0x230] sm:$0xff]
    %v89 = vld [vmem:[%s0 + $0x238] sm:$0xff]
    %v90 = vld [vmem:[%s0 + $0x240] sm:$0xff]
    %v91 = vld [vmem:[%s0 + $0x248] sm:$0xff]
    %v92 = vld [vmem:[%s0 + $0x250] sm:$0xff]
    %v93 = vld [vmem:[%s0 + $0x258] sm:$0xff]
    %v94 = vld [vmem:[%s0 + $0x260] sm:$0xff]
    %v95 = vld [vmem:[%s0 + $0x268] sm:$0xff]
    %v96 = vld [vmem:[%s0 + $0x270] sm:$0xff]
    %v97 = vld [vmem:[%s0 + $0x278] sm:$0xff]
    %v98 = vld [vmem:[%s0 + $0x280] sm:$0xff]
    %v99 = vld [vmem:[%s0 + $0x288] sm:$0xff]
    %v100 = vld [vmem:[%s0 + $0x290] sm:$0xff]
    %v101 = vld [vmem:[%s0 + $0x298] sm:$0xff]
    %v102 = vld [vmem:[%s0 + $0x2a0] sm:$0xff]
    %v103 = vld [vmem:[%s0 + $0x2a8] sm:$0xff]
    %v104 = vld [vmem:[%s0 + $0x2b0] sm:$0xff]
    %v105 = vld [vmem:[%s0 + $0x2b8] sm:$0xff]
    %v106 = vld [vmem:[%s0 + $0x2c0] sm:$0xff]
    %v107 = vld [vmem:[%s0 + $0x2c8] sm:$0xff]
    %v108 = vld [vmem:[%s0 + $0x2d0] sm:$0xff]
    %v109 = vld [vmem:[%s0 + $0x2d8] sm:$0xff]
    %v110 = vld [vmem:[%s0 + $0x2e0] sm:$0xff]
    %v111 = vld [vmem:[%s0 + $0x2e8] sm:$0xff]
    %v112 = vld [vmem:[%s0 + $0x2f0] sm:$0xff]
    %v113 = vld [vmem:[%s0 + $0x2f8] sm:$0xff]
    %v114 = vld [vmem:[%s0 + $0x300] sm:$0xff]
    %v115 = vld [vmem:[%s0 + $0x308] sm:$0xff]
    %v116 = vld [vmem:[%s0 + $0x310] sm:$0xff]
    %v117 = vld [vmem:[%s0 + $0x318] sm:$0xff]
    %v118 = vld [vmem:[%s0 + $0x320] sm:$0xff]
    %v119 = vld [vmem:[%s0 + $0x328] sm:$0xff]
    %v120 = vld [vmem:[%s0 + $0x330] sm:$0xff]
    %v121 = vld [vmem:[%s0 + $0x338] sm:$0xff]
    %v122 = vld [vmem:[%s0 + $0x340] sm:$0xff]
    %v123 = vld [vmem:[%s0 + $0x348] sm:$0xff]
    %v124 = vld [vmem:[%s0 + $0x350] sm:$0xff]
    %v125 = vld [vmem:[%s0 + $0x358] sm:$0xff]
    %v126 = vld [vmem:[%s0 + $0x360] sm:$0xff]
    %v127 = vld [vmem:[%s0 + $0x368] sm:$0xff]
    %v128 = vld [vmem:[%s0 + $0x370] sm:$0xff]
    %v129 = vld [vmem:[%s0 + $0x378] sm:$0xff]
    %v130 = vld [vmem:[%s0 + $0x380] sm:$0xff]
    %v131 = vld [vmem:[%s0 + $0x388] sm:$0xff]
    %v132 = vld [vmem:[%s0 + $0x390] sm:$0xff]
    %v133 = vld [vmem:[%s0 + $0x398] sm:$0xff]
    %v134 = vld [vmem:[%s0 + $0x3a0] sm:$0xff]
    %v135 = vld [vmem:[%s0 + $0x3a8] sm:$0xff]
    %v136 = vld [vmem:[%s0 + $0x3b0] sm:$0xff]
    %v137 = vld [vmem:[%s0 + $0x3b8] sm:$0xff]
    %v138 = vld [vmem:[%s0 + $0x3c0] sm:$0xff]
    %v139 = vld [vmem:[%s0 + $0x3c8] sm:$0xff]
    %v140 = vld [vmem:[%s0 + $0x3d0] sm:$0xff]
    %v141 = vld [vmem:[%s0 + $0x3d8] sm:$0xff]
    %v142 = vld [vmem:[%s0 + $0x3e0] sm:$0xff]
    %v143 = vld [vmem:[%s2] sm:$0xff]
    %v144 = vld [vmem:[%s2 + $0x8] sm:$0xff]
    %v145 = vld [vmem:[%s3] sm:$0x3]
    %v146 = vperm.slane %v145, 0
    %vm147 = vcmask 130048
    %v149 = vsel %vm147, %v18, 0
    %v152 = vsel %vm147, %v19, 0
    %v155 = vsel %vm147, %v20, 0
    %v158 = vsel %vm147, %v21, 0
    %v161 = vsel %vm147, %v22, 0
    %v164 = vsel %vm147, %v23, 0
    %v167 = vsel %vm147, %v24, 0
    %v170 = vsel %vm147, %v25, 0
    %v173 = vsel %vm147, %v26, 0
    %v176 = vsel %vm147, %v27, 0
    %v179 = vsel %vm147, %v28, 0
    %v182 = vsel %vm147, %v29, 0
    %v185 = vsel %vm147, %v30, 0
    %v188 = vsel %vm147, %v31, 0
    %v191 = vsel %vm147, %v32, 0
    %v194 = vsel %vm147, %v33, 0
    %v197 = vsel %vm147, %v34, 0
    %v200 = vsel %vm147, %v35, 0
    %v203 = vsel %vm147, %v36, 0
    %v206 = vsel %vm147, %v37, 0
    %v209 = vsel %vm147, %v38, 0
    %v212 = vsel %vm147, %v39, 0
    %v215 = vsel %vm147, %v40, 0
    %v218 = vsel %vm147, %v41, 0
    %v221 = vsel %vm147, %v42, 0
    %v224 = vsel %vm147, %v43, 0
    %v227 = vsel %vm147, %v44, 0
    %v230 = vsel %vm147, %v45, 0
    %v233 = vsel %vm147, %v46, 0
    %v236 = vsel %vm147, %v47, 0
    %v239 = vsel %vm147, %v48, 0
    %v242 = vsel %vm147, %v49, 0
    %v245 = vsel %vm147, %v50, 0
    %v248 = vsel %vm147, %v51, 0
    %v251 = vsel %vm147, %v52, 0
    %v254 = vsel %vm147, %v53, 0
    %v257 = vsel %vm147, %v54, 0
    %v260 = vsel %vm147, %v55, 0
    %v263 = vsel %vm147, %v56, 0
    %v266 = vsel %vm147, %v57, 0
    %v269 = vsel %vm147, %v58, 0
    %v272 = vsel %vm147, %v59, 0
    %v275 = vsel %vm147, %v60, 0
    %v278 = vsel %vm147, %v61, 0
    %v281 = vsel %vm147, %v62, 0
    %v284 = vsel %vm147, %v63, 0
    %v287 = vsel %vm147, %v64, 0
    %v290 = vsel %vm147, %v65, 0
    %v293 = vsel %vm147, %v66, 0
    %v296 = vsel %vm147, %v67, 0
    %v299 = vsel %vm147, %v68, 0
    %v302 = vsel %vm147, %v69, 0
    %v305 = vsel %vm147, %v70, 0
    %v308 = vsel %vm147, %v71, 0
    %v311 = vsel %vm147, %v72, 0
    %v314 = vsel %vm147, %v73, 0
    %v317 = vsel %vm147, %v74, 0
    %v320 = vsel %vm147, %v75, 0
    %v323 = vsel %vm147, %v76, 0
    %v326 = vsel %vm147, %v77, 0
    %v329 = vsel %vm147, %v78, 0
    %v332 = vsel %vm147, %v79, 0
    %v335 = vsel %vm147, %v80, 0
    %v338 = vsel %vm147, %v81, 0
    %v341 = vsel %vm147, %v82, 0
    %v344 = vsel %vm147, %v83, 0
    %v347 = vsel %vm147, %v84, 0
    %v350 = vsel %vm147, %v85, 0
    %v353 = vsel %vm147, %v86, 0
    %v356 = vsel %vm147, %v87, 0
    %v359 = vsel %vm147, %v88, 0
    %v362 = vsel %vm147, %v89, 0
    %v365 = vsel %vm147, %v90, 0
    %v368 = vsel %vm147, %v91, 0
    %v371 = vsel %vm147, %v92, 0
    %v374 = vsel %vm147, %v93, 0
    %v377 = vsel %vm147, %v94, 0
    %v380 = vsel %vm147, %v95, 0
    %v383 = vsel %vm147, %v96, 0
    %v386 = vsel %vm147, %v97, 0
    %v389 = vsel %vm147, %v98, 0
    %v392 = vsel %vm147, %v99, 0
    %v395 = vsel %vm147, %v100, 0
    %v398 = vsel %vm147, %v101, 0
    %v401 = vsel %vm147, %v102, 0
    %v404 = vsel %vm147, %v103, 0
    %v407 = vsel %vm147, %v104, 0
    %v410 = vsel %vm147, %v105, 0
    %v413 = vsel %vm147, %v106, 0
    %v416 = vsel %vm147, %v107, 0
    %v419 = vsel %vm147, %v108, 0
    %v422 = vsel %vm147, %v109, 0
    %v425 = vsel %vm147, %v110, 0
    %v428 = vsel %vm147, %v111, 0
    %v431 = vsel %vm147, %v112, 0
    %v434 = vsel %vm147, %v113, 0
    %v437 = vsel %vm147, %v114, 0
    %v440 = vsel %vm147, %v115, 0
    %v443 = vsel %vm147, %v116, 0
    %v446 = vsel %vm147, %v117, 0
    %v449 = vsel %vm147, %v118, 0
    %v452 = vsel %vm147, %v119, 0
    %v455 = vsel %vm147, %v120, 0
    %v458 = vsel %vm147, %v121, 0
    %v461 = vsel %vm147, %v122, 0
    %v464 = vsel %vm147, %v123, 0
    %v467 = vsel %vm147, %v124, 0
    %v470 = vsel %vm147, %v125, 0
    %v473 = vsel %vm147, %v126, 0
    %v476 = vsel %vm147, %v127, 0
    %v479 = vsel %vm147, %v128, 0
    %v482 = vsel %vm147, %v129, 0
    %v485 = vsel %vm147, %v130, 0
    %v488 = vsel %vm147, %v131, 0
    %v491 = vsel %vm147, %v132, 0
    %v494 = vsel %vm147, %v133, 0
    %v497 = vsel %vm147, %v134, 0
    %v500 = vsel %vm147, %v135, 0
    %v503 = vsel %vm147, %v136, 0
    %v506 = vsel %vm147, %v137, 0
    %v509 = vsel %vm147, %v138, 0
    %v512 = vsel %vm147, %v139, 0
    %v515 = vsel %vm147, %v140, 0
    %v518 = vsel %vm147, %v141, 0
    %v521 = vsel %vm147, %v142, 0
    %523 = vmatpush.msra.mxu0 0.0
    %524 = vmatpush.msra.mxu0 0.0
    %525 = vmatpush.msra.mxu0 0.0
    %526 = vmatpush.msra.mxu0 0.0
    %527 = vmatpush.msra.mxu0 0.0
    %528 = vmatpush.msra.mxu0 0.0
    %529 = vmatpush.msra.mxu0 0.0
    %530 = vmatpush.msra.mxu0 0.0
    %531 = vmatpush.msra.mxu0 0.0
    %532 = vmatpush.msra.mxu0 0.0
    %533 = vmatpush.msra.mxu0 0.0
    %534 = vmatpush.msra.mxu0 0.0
    %535 = vmatpush.msra.mxu0 0.0
    %536 = vmatpush.msra.mxu0 0.0
    %537 = vmatpush.msra.mxu0 %v144
    %538 = vmatpush.msra.mxu0 %v143
    %539 = vmatmul.f32.gmra.mxu0 %v149
    %v540 = vpop.f32.mrf.mxu0
    %v541 = vadd.f32 %v146, %v540
    %542 = vmatmul.f32.gmra.mxu0 %v152
    %v543 = vpop.f32.mrf.mxu0
    %v544 = vadd.f32 %v146, %v543
    %545 = vmatmul.f32.gmra.mxu0 %v155
    %v546 = vpop.f32.mrf.mxu0
    %v547 = vadd.f32 %v146, %v546
    %548 = vmatmul.f32.gmra.mxu0 %v158
    %v549 = vpop.f32.mrf.mxu0
    %v550 = vadd.f32 %v146, %v549
    %551 = vmatmul.f32.gmra.mxu0 %v161
    %v552 = vpop.f32.mrf.mxu0
    %v553 = vadd.f32 %v146, %v552
    %554 = vmatmul.f32.gmra.mxu0 %v164
    %v555 = vpop.f32.mrf.mxu0
    %v556 = vadd.f32 %v146, %v555
    %557 = vmatmul.f32.gmra.mxu0 %v167
    %v558 = vpop.f32.mrf.mxu0
    %v559 = vadd.f32 %v146, %v558
    %560 = vmatmul.f32.gmra.mxu0 %v170
    %v561 = vpop.f32.mrf.mxu0
    %v562 = vadd.f32 %v146, %v561
    %563 = vmatmul.f32.gmra.mxu0 %v173
    %v564 = vpop.f32.mrf.mxu0
    %v565 = vadd.f32 %v146, %v564
    %566 = vmatmul.f32.gmra.mxu0 %v176
    %v567 = vpop.f32.mrf.mxu0
    %v568 = vadd.f32 %v146, %v567
    %569 = vmatmul.f32.gmra.mxu0 %v179
    %v570 = vpop.f32.mrf.mxu0
    %v571 = vadd.f32 %v146, %v570
    %572 = vmatmul.f32.gmra.mxu0 %v182
    %v573 = vpop.f32.mrf.mxu0
    %v574 = vadd.f32 %v146, %v573
    %575 = vmatmul.f32.gmra.mxu0 %v185
    %v576 = vpop.f32.mrf.mxu0
    %v577 = vadd.f32 %v146, %v576
    %578 = vmatmul.f32.gmra.mxu0 %v188
    %v579 = vpop.f32.mrf.mxu0
    %v580 = vadd.f32 %v146, %v579
    %581 = vmatmul.f32.gmra.mxu0 %v191
    %v582 = vpop.f32.mrf.mxu0
    %v583 = vadd.f32 %v146, %v582
    %584 = vmatmul.f32.gmra.mxu0 %v194
    %v585 = vpop.f32.mrf.mxu0
    %v586 = vadd.f32 %v146, %v585
    %587 = vmatmul.f32.gmra.mxu0 %v197
    %v588 = vpop.f32.mrf.mxu0
    %v589 = vadd.f32 %v146, %v588
    %590 = vmatmul.f32.gmra.mxu0 %v200
    %v591 = vpop.f32.mrf.mxu0
    %v592 = vadd.f32 %v146, %v591
    %593 = vmatmul.f32.gmra.mxu0 %v203
    %v594 = vpop.f32.mrf.mxu0
    %v595 = vadd.f32 %v146, %v594
    %596 = vmatmul.f32.gmra.mxu0 %v206
    %v597 = vpop.f32.mrf.mxu0
    %v598 = vadd.f32 %v146, %v597
    %599 = vmatmul.f32.gmra.mxu0 %v209
    %v600 = vpop.f32.mrf.mxu0
    %v601 = vadd.f32 %v146, %v600
    %602 = vmatmul.f32.gmra.mxu0 %v212
    %v603 = vpop.f32.mrf.mxu0
    %v604 = vadd.f32 %v146, %v603
    %605 = vmatmul.f32.gmra.mxu0 %v215
    %v606 = vpop.f32.mrf.mxu0
    %v607 = vadd.f32 %v146, %v606
    %608 = vmatmul.f32.gmra.mxu0 %v218
    %v609 = vpop.f32.mrf.mxu0
    %v610 = vadd.f32 %v146, %v609
    %611 = vmatmul.f32.gmra.mxu0 %v221
    %v612 = vpop.f32.mrf.mxu0
    %v613 = vadd.f32 %v146, %v612
    %614 = vmatmul.f32.gmra.mxu0 %v224
    %v615 = vpop.f32.mrf.mxu0
    %v616 = vadd.f32 %v146, %v615
    %617 = vmatmul.f32.gmra.mxu0 %v227
    %v618 = vpop.f32.mrf.mxu0
    %v619 = vadd.f32 %v146, %v618
    %620 = vmatmul.f32.gmra.mxu0 %v230
    %v621 = vpop.f32.mrf.mxu0
    %v622 = vadd.f32 %v146, %v621
    %623 = vmatmul.f32.gmra.mxu0 %v233
    %v624 = vpop.f32.mrf.mxu0
    %v625 = vadd.f32 %v146, %v624
    %626 = vmatmul.f32.gmra.mxu0 %v236
    %v627 = vpop.f32.mrf.mxu0
    %v628 = vadd.f32 %v146, %v627
    %629 = vmatmul.f32.gmra.mxu0 %v239
    %v630 = vpop.f32.mrf.mxu0
    %v631 = vadd.f32 %v146, %v630
    %632 = vmatmul.f32.gmra.mxu0 %v242
    %v633 = vpop.f32.mrf.mxu0
    %v634 = vadd.f32 %v146, %v633
    %635 = vmatmul.f32.gmra.mxu0 %v245
    %v636 = vpop.f32.mrf.mxu0
    %v637 = vadd.f32 %v146, %v636
    %638 = vmatmul.f32.gmra.mxu0 %v248
    %v639 = vpop.f32.mrf.mxu0
    %v640 = vadd.f32 %v146, %v639
    %641 = vmatmul.f32.gmra.mxu0 %v251
    %v642 = vpop.f32.mrf.mxu0
    %v643 = vadd.f32 %v146, %v642
    %644 = vmatmul.f32.gmra.mxu0 %v254
    %v645 = vpop.f32.mrf.mxu0
    %v646 = vadd.f32 %v146, %v645
    %647 = vmatmul.f32.gmra.mxu0 %v257
    %v648 = vpop.f32.mrf.mxu0
    %v649 = vadd.f32 %v146, %v648
    %650 = vmatmul.f32.gmra.mxu0 %v260
    %v651 = vpop.f32.mrf.mxu0
    %v652 = vadd.f32 %v146, %v651
    %653 = vmatmul.f32.gmra.mxu0 %v263
    %v654 = vpop.f32.mrf.mxu0
    %v655 = vadd.f32 %v146, %v654
    %656 = vmatmul.f32.gmra.mxu0 %v266
    %v657 = vpop.f32.mrf.mxu0
    %v658 = vadd.f32 %v146, %v657
    %659 = vmatmul.f32.gmra.mxu0 %v269
    %v660 = vpop.f32.mrf.mxu0
    %v661 = vadd.f32 %v146, %v660
    %662 = vmatmul.f32.gmra.mxu0 %v272
    %v663 = vpop.f32.mrf.mxu0
    %v664 = vadd.f32 %v146, %v663
    %665 = vmatmul.f32.gmra.mxu0 %v275
    %v666 = vpop.f32.mrf.mxu0
    %v667 = vadd.f32 %v146, %v666
    %668 = vmatmul.f32.gmra.mxu0 %v278
    %v669 = vpop.f32.mrf.mxu0
    %v670 = vadd.f32 %v146, %v669
    %671 = vmatmul.f32.gmra.mxu0 %v281
    %v672 = vpop.f32.mrf.mxu0
    %v673 = vadd.f32 %v146, %v672
    %674 = vmatmul.f32.gmra.mxu0 %v284
    %v675 = vpop.f32.mrf.mxu0
    %v676 = vadd.f32 %v146, %v675
    %677 = vmatmul.f32.gmra.mxu0 %v287
    %v678 = vpop.f32.mrf.mxu0
    %v679 = vadd.f32 %v146, %v678
    %680 = vmatmul.f32.gmra.mxu0 %v290
    %v681 = vpop.f32.mrf.mxu0
    %v682 = vadd.f32 %v146, %v681
    %683 = vmatmul.f32.gmra.mxu0 %v293
    %v684 = vpop.f32.mrf.mxu0
    %v685 = vadd.f32 %v146, %v684
    %686 = vmatmul.f32.gmra.mxu0 %v296
    %v687 = vpop.f32.mrf.mxu0
    %v688 = vadd.f32 %v146, %v687
    %689 = vmatmul.f32.gmra.mxu0 %v299
    %v690 = vpop.f32.mrf.mxu0
    %v691 = vadd.f32 %v146, %v690
    %692 = vmatmul.f32.gmra.mxu0 %v302
    %v693 = vpop.f32.mrf.mxu0
    %v694 = vadd.f32 %v146, %v693
    %695 = vmatmul.f32.gmra.mxu0 %v305
    %v696 = vpop.f32.mrf.mxu0
    %v697 = vadd.f32 %v146, %v696
    %698 = vmatmul.f32.gmra.mxu0 %v308
    %v699 = vpop.f32.mrf.mxu0
    %v700 = vadd.f32 %v146, %v699
    %701 = vmatmul.f32.gmra.mxu0 %v311
    %v702 = vpop.f32.mrf.mxu0
    %v703 = vadd.f32 %v146, %v702
    %704 = vmatmul.f32.gmra.mxu0 %v314
    %v705 = vpop.f32.mrf.mxu0
    %v706 = vadd.f32 %v146, %v705
    %707 = vmatmul.f32.gmra.mxu0 %v317
    %v708 = vpop.f32.mrf.mxu0
    %v709 = vadd.f32 %v146, %v708
    %710 = vmatmul.f32.gmra.mxu0 %v320
    %v711 = vpop.f32.mrf.mxu0
    %v712 = vadd.f32 %v146, %v711
    %713 = vmatmul.f32.gmra.mxu0 %v323
    %v714 = vpop.f32.mrf.mxu0
    %v715 = vadd.f32 %v146, %v714
    %716 = vmatmul.f32.gmra.mxu0 %v326
    %v717 = vpop.f32.mrf.mxu0
    %v718 = vadd.f32 %v146, %v717
    %719 = vmatmul.f32.gmra.mxu0 %v329
    %v720 = vpop.f32.mrf.mxu0
    %v721 = vadd.f32 %v146, %v720
    %722 = vmatmul.f32.gmra.mxu0 %v332
    %v723 = vpop.f32.mrf.mxu0
    %v724 = vadd.f32 %v146, %v723
    %725 = vmatmul.f32.gmra.mxu0 %v335
    %v726 = vpop.f32.mrf.mxu0
    %v727 = vadd.f32 %v146, %v726
    %728 = vmatmul.f32.gmra.mxu0 %v338
    %v729 = vpop.f32.mrf.mxu0
    %v730 = vadd.f32 %v146, %v729
    %731 = vmatmul.f32.gmra.mxu0 %v341
    %v732 = vpop.f32.mrf.mxu0
    %v733 = vadd.f32 %v146, %v732
    %734 = vmatmul.f32.gmra.mxu0 %v344
    %v735 = vpop.f32.mrf.mxu0
    %v736 = vadd.f32 %v146, %v735
    %737 = vmatmul.f32.gmra.mxu0 %v347
    %v738 = vpop.f32.mrf.mxu0
    %v739 = vadd.f32 %v146, %v738
    %740 = vmatmul.f32.gmra.mxu0 %v350
    %v741 = vpop.f32.mrf.mxu0
    %v742 = vadd.f32 %v146, %v741
    %743 = vmatmul.f32.gmra.mxu0 %v353
    %v744 = vpop.f32.mrf.mxu0
    %v745 = vadd.f32 %v146, %v744
    %746 = vmatmul.f32.gmra.mxu0 %v356
    %v747 = vpop.f32.mrf.mxu0
    %v748 = vadd.f32 %v146, %v747
    %749 = vmatmul.f32.gmra.mxu0 %v359
    %v750 = vpop.f32.mrf.mxu0
    %v751 = vadd.f32 %v146, %v750
    %752 = vmatmul.f32.gmra.mxu0 %v362
    %v753 = vpop.f32.mrf.mxu0
    %v754 = vadd.f32 %v146, %v753
    %755 = vmatmul.f32.gmra.mxu0 %v365
    %v756 = vpop.f32.mrf.mxu0
    %v757 = vadd.f32 %v146, %v756
    %758 = vmatmul.f32.gmra.mxu0 %v368
    %v759 = vpop.f32.mrf.mxu0
    %v760 = vadd.f32 %v146, %v759
    %761 = vmatmul.f32.gmra.mxu0 %v371
    %v762 = vpop.f32.mrf.mxu0
    %v763 = vadd.f32 %v146, %v762
    %764 = vmatmul.f32.gmra.mxu0 %v374
    %v765 = vpop.f32.mrf.mxu0
    %v766 = vadd.f32 %v146, %v765
    %767 = vmatmul.f32.gmra.mxu0 %v377
    %v768 = vpop.f32.mrf.mxu0
    %v769 = vadd.f32 %v146, %v768
    %770 = vmatmul.f32.gmra.mxu0 %v380
    %v771 = vpop.f32.mrf.mxu0
    %v772 = vadd.f32 %v146, %v771
    %773 = vmatmul.f32.gmra.mxu0 %v383
    %v774 = vpop.f32.mrf.mxu0
    %v775 = vadd.f32 %v146, %v774
    %776 = vmatmul.f32.gmra.mxu0 %v386
    %v777 = vpop.f32.mrf.mxu0
    %v778 = vadd.f32 %v146, %v777
    %779 = vmatmul.f32.gmra.mxu0 %v389
    %v780 = vpop.f32.mrf.mxu0
    %v781 = vadd.f32 %v146, %v780
    %782 = vmatmul.f32.gmra.mxu0 %v392
    %v783 = vpop.f32.mrf.mxu0
    %v784 = vadd.f32 %v146, %v783
    %785 = vmatmul.f32.gmra.mxu0 %v395
    %v786 = vpop.f32.mrf.mxu0
    %v787 = vadd.f32 %v146, %v786
    %788 = vmatmul.f32.gmra.mxu0 %v398
    %v789 = vpop.f32.mrf.mxu0
    %v790 = vadd.f32 %v146, %v789
    %791 = vmatmul.f32.gmra.mxu0 %v401
    %v792 = vpop.f32.mrf.mxu0
    %v793 = vadd.f32 %v146, %v792
    %794 = vmatmul.f32.gmra.mxu0 %v404
    %v795 = vpop.f32.mrf.mxu0
    %v796 = vadd.f32 %v146, %v795
    %797 = vmatmul.f32.gmra.mxu0 %v407
    %v798 = vpop.f32.mrf.mxu0
    %v799 = vadd.f32 %v146, %v798
    %800 = vmatmul.f32.gmra.mxu0 %v410
    %v801 = vpop.f32.mrf.mxu0
    %v802 = vadd.f32 %v146, %v801
    %803 = vmatmul.f32.gmra.mxu0 %v413
    %v804 = vpop.f32.mrf.mxu0
    %v805 = vadd.f32 %v146, %v804
    %806 = vmatmul.f32.gmra.mxu0 %v416
    %v807 = vpop.f32.mrf.mxu0
    %v808 = vadd.f32 %v146, %v807
    %809 = vmatmul.f32.gmra.mxu0 %v419
    %v810 = vpop.f32.mrf.mxu0
    %v811 = vadd.f32 %v146, %v810
    %812 = vmatmul.f32.gmra.mxu0 %v422
    %v813 = vpop.f32.mrf.mxu0
    %v814 = vadd.f32 %v146, %v813
    %815 = vmatmul.f32.gmra.mxu0 %v425
    %v816 = vpop.f32.mrf.mxu0
    %v817 = vadd.f32 %v146, %v816
    %818 = vmatmul.f32.gmra.mxu0 %v428
    %v819 = vpop.f32.mrf.mxu0
    %v820 = vadd.f32 %v146, %v819
    %821 = vmatmul.f32.gmra.mxu0 %v431
    %v822 = vpop.f32.mrf.mxu0
    %v823 = vadd.f32 %v146, %v822
    %824 = vmatmul.f32.gmra.mxu0 %v434
    %v825 = vpop.f32.mrf.mxu0
    %v826 = vadd.f32 %v146, %v825
    %827 = vmatmul.f32.gmra.mxu0 %v437
    %v828 = vpop.f32.mrf.mxu0
    %v829 = vadd.f32 %v146, %v828
    %830 = vmatmul.f32.gmra.mxu0 %v440
    %v831 = vpop.f32.mrf.mxu0
    %v832 = vadd.f32 %v146, %v831
    %833 = vmatmul.f32.gmra.mxu0 %v443
    %v834 = vpop.f32.mrf.mxu0
    %v835 = vadd.f32 %v146, %v834
    %836 = vmatmul.f32.gmra.mxu0 %v446
    %v837 = vpop.f32.mrf.mxu0
    %v838 = vadd.f32 %v146, %v837
    %839 = vmatmul.f32.gmra.mxu0 %v449
    %v840 = vpop.f32.mrf.mxu0
    %v841 = vadd.f32 %v146, %v840
    %842 = vmatmul.f32.gmra.mxu0 %v452
    %v843 = vpop.f32.mrf.mxu0
    %v844 = vadd.f32 %v146, %v843
    %845 = vmatmul.f32.gmra.mxu0 %v455
    %v846 = vpop.f32.mrf.mxu0
    %v847 = vadd.f32 %v146, %v846
    %848 = vmatmul.f32.gmra.mxu0 %v458
    %v849 = vpop.f32.mrf.mxu0
    %v850 = vadd.f32 %v146, %v849
    %851 = vmatmul.f32.gmra.mxu0 %v461
    %v852 = vpop.f32.mrf.mxu0
    %v853 = vadd.f32 %v146, %v852
    %854 = vmatmul.f32.gmra.mxu0 %v464
    %v855 = vpop.f32.mrf.mxu0
    %v856 = vadd.f32 %v146, %v855
    %857 = vmatmul.f32.gmra.mxu0 %v467
    %v858 = vpop.f32.mrf.mxu0
    %v859 = vadd.f32 %v146, %v858
    %860 = vmatmul.f32.gmra.mxu0 %v470
    %v861 = vpop.f32.mrf.mxu0
    %v862 = vadd.f32 %v146, %v861
    %863 = vmatmul.f32.gmra.mxu0 %v473
    %v864 = vpop.f32.mrf.mxu0
    %v865 = vadd.f32 %v146, %v864
    %866 = vmatmul.f32.gmra.mxu0 %v476
    %v867 = vpop.f32.mrf.mxu0
    %v868 = vadd.f32 %v146, %v867
    %869 = vmatmul.f32.gmra.mxu0 %v479
    %v870 = vpop.f32.mrf.mxu0
    %v871 = vadd.f32 %v146, %v870
    %872 = vmatmul.f32.gmra.mxu0 %v482
    %v873 = vpop.f32.mrf.mxu0
    %v874 = vadd.f32 %v146, %v873
    %875 = vmatmul.f32.gmra.mxu0 %v485
    %v876 = vpop.f32.mrf.mxu0
    %v877 = vadd.f32 %v146, %v876
    %878 = vmatmul.f32.gmra.mxu0 %v488
    %v879 = vpop.f32.mrf.mxu0
    %v880 = vadd.f32 %v146, %v879
    %881 = vmatmul.f32.gmra.mxu0 %v491
    %v882 = vpop.f32.mrf.mxu0
    %v883 = vadd.f32 %v146, %v882
    %884 = vmatmul.f32.gmra.mxu0 %v494
    %v885 = vpop.f32.mrf.mxu0
    %v886 = vadd.f32 %v146, %v885
    %887 = vmatmul.f32.gmra.mxu0 %v497
    %v888 = vpop.f32.mrf.mxu0
    %v889 = vadd.f32 %v146, %v888
    %890 = vmatmul.f32.gmra.mxu0 %v500
    %v891 = vpop.f32.mrf.mxu0
    %v892 = vadd.f32 %v146, %v891
    %893 = vmatmul.f32.gmra.mxu0 %v503
    %v894 = vpop.f32.mrf.mxu0
    %v895 = vadd.f32 %v146, %v894
    %896 = vmatmul.f32.gmra.mxu0 %v506
    %v897 = vpop.f32.mrf.mxu0
    %v898 = vadd.f32 %v146, %v897
    %899 = vmatmul.f32.gmra.mxu0 %v509
    %v900 = vpop.f32.mrf.mxu0
    %v901 = vadd.f32 %v146, %v900
    %902 = vmatmul.f32.gmra.mxu0 %v512
    %v903 = vpop.f32.mrf.mxu0
    %v904 = vadd.f32 %v146, %v903
    %905 = vmatmul.f32.gmra.mxu0 %v515
    %v906 = vpop.f32.mrf.mxu0
    %v907 = vadd.f32 %v146, %v906
    %908 = vmatmul.f32.gmra.mxu0 %v518
    %v909 = vpop.f32.mrf.mxu0
    %v910 = vadd.f32 %v146, %v909
    %911 = vmatmul.f32.gmra.mxu0 %v521
    %v912 = vpop.f32.mrf.mxu0
    %v913 = vadd.f32 %v146, %v912
    %914 = vdwg.mxu0
    %v915 = vld [vmem:[%s1] sm:$0xff]
    %v916 = vld [vmem:[%s1 + $0x8] sm:$0xff]
    %v917 = vld [vmem:[%s1 + $0x10] sm:$0xff]
    %v918 = vld [vmem:[%s1 + $0x18] sm:$0xff]
    %v919 = vld [vmem:[%s1 + $0x20] sm:$0xff]
    %v920 = vld [vmem:[%s1 + $0x28] sm:$0xff]
    %v921 = vld [vmem:[%s1 + $0x30] sm:$0xff]
    %v922 = vld [vmem:[%s1 + $0x38] sm:$0xff]
    %v923 = vld [vmem:[%s1 + $0x40] sm:$0xff]
    %v924 = vld [vmem:[%s1 + $0x48] sm:$0xff]
    %v925 = vld [vmem:[%s1 + $0x50] sm:$0xff]
    %v926 = vld [vmem:[%s1 + $0x58] sm:$0xff]
    %v927 = vld [vmem:[%s1 + $0x60] sm:$0xff]
    %v928 = vld [vmem:[%s1 + $0x68] sm:$0xff]
    %v929 = vld [vmem:[%s1 + $0x70] sm:$0xff]
    %v930 = vld [vmem:[%s1 + $0x78] sm:$0xff]
    %v931 = vld [vmem:[%s1 + $0x80] sm:$0xff]
    %v932 = vld [vmem:[%s1 + $0x88] sm:$0xff]
    %v933 = vld [vmem:[%s1 + $0x90] sm:$0xff]
    %v934 = vld [vmem:[%s1 + $0x98] sm:$0xff]
    %v935 = vld [vmem:[%s1 + $0xa0] sm:$0xff]
    %v936 = vld [vmem:[%s1 + $0xa8] sm:$0xff]
    %v937 = vld [vmem:[%s1 + $0xb0] sm:$0xff]
    %v938 = vld [vmem:[%s1 + $0xb8] sm:$0xff]
    %v939 = vld [vmem:[%s1 + $0xc0] sm:$0xff]
    %v940 = vld [vmem:[%s1 + $0xc8] sm:$0xff]
    %v941 = vld [vmem:[%s1 + $0xd0] sm:$0xff]
    %v942 = vld [vmem:[%s1 + $0xd8] sm:$0xff]
    %v943 = vld [vmem:[%s1 + $0xe0] sm:$0xff]
    %v944 = vld [vmem:[%s1 + $0xe8] sm:$0xff]
    %v945 = vld [vmem:[%s1 + $0xf0] sm:$0xff]
    %v946 = vld [vmem:[%s1 + $0xf8] sm:$0xff]
    %v947 = vld [vmem:[%s1 + $0x100] sm:$0xff]
    %v948 = vld [vmem:[%s1 + $0x108] sm:$0xff]
    %v949 = vld [vmem:[%s1 + $0x110] sm:$0xff]
    %v950 = vld [vmem:[%s1 + $0x118] sm:$0xff]
    %v951 = vld [vmem:[%s1 + $0x120] sm:$0xff]
    %v952 = vld [vmem:[%s1 + $0x128] sm:$0xff]
    %v953 = vld [vmem:[%s1 + $0x130] sm:$0xff]
    %v954 = vld [vmem:[%s1 + $0x138] sm:$0xff]
    %v955 = vld [vmem:[%s1 + $0x140] sm:$0xff]
    %v956 = vld [vmem:[%s1 + $0x148] sm:$0xff]
    %v957 = vld [vmem:[%s1 + $0x150] sm:$0xff]
    %v958 = vld [vmem:[%s1 + $0x158] sm:$0xff]
    %v959 = vld [vmem:[%s1 + $0x160] sm:$0xff]
    %v960 = vld [vmem:[%s1 + $0x168] sm:$0xff]
    %v961 = vld [vmem:[%s1 + $0x170] sm:$0xff]
    %v962 = vld [vmem:[%s1 + $0x178] sm:$0xff]
    %v963 = vld [vmem:[%s1 + $0x180] sm:$0xff]
    %v964 = vld [vmem:[%s1 + $0x188] sm:$0xff]
    %v965 = vld [vmem:[%s1 + $0x190] sm:$0xff]
    %v966 = vld [vmem:[%s1 + $0x198] sm:$0xff]
    %v967 = vld [vmem:[%s1 + $0x1a0] sm:$0xff]
    %v968 = vld [vmem:[%s1 + $0x1a8] sm:$0xff]
    %v969 = vld [vmem:[%s1 + $0x1b0] sm:$0xff]
    %v970 = vld [vmem:[%s1 + $0x1b8] sm:$0xff]
    %v971 = vld [vmem:[%s1 + $0x1c0] sm:$0xff]
    %v972 = vld [vmem:[%s1 + $0x1c8] sm:$0xff]
    %v973 = vld [vmem:[%s1 + $0x1d0] sm:$0xff]
    %v974 = vld [vmem:[%s1 + $0x1d8] sm:$0xff]
    %v975 = vld [vmem:[%s1 + $0x1e0] sm:$0xff]
    %v976 = vld [vmem:[%s1 + $0x1e8] sm:$0xff]
    %v977 = vld [vmem:[%s1 + $0x1f0] sm:$0xff]
    %v978 = vld [vmem:[%s1 + $0x1f8] sm:$0xff]
    %v979 = vld [vmem:[%s1 + $0x200] sm:$0xff]
    %v980 = vld [vmem:[%s1 + $0x208] sm:$0xff]
    %v981 = vld [vmem:[%s1 + $0x210] sm:$0xff]
    %v982 = vld [vmem:[%s1 + $0x218] sm:$0xff]
    %v983 = vld [vmem:[%s1 + $0x220] sm:$0xff]
    %v984 = vld [vmem:[%s1 + $0x228] sm:$0xff]
    %v985 = vld [vmem:[%s1 + $0x230] sm:$0xff]
    %v986 = vld [vmem:[%s1 + $0x238] sm:$0xff]
    %v987 = vld [vmem:[%s1 + $0x240] sm:$0xff]
    %v988 = vld [vmem:[%s1 + $0x248] sm:$0xff]
    %v989 = vld [vmem:[%s1 + $0x250] sm:$0xff]
    %v990 = vld [vmem:[%s1 + $0x258] sm:$0xff]
    %v991 = vld [vmem:[%s1 + $0x260] sm:$0xff]
    %v992 = vld [vmem:[%s1 + $0x268] sm:$0xff]
    %v993 = vld [vmem:[%s1 + $0x270] sm:$0xff]
    %v994 = vld [vmem:[%s1 + $0x278] sm:$0xff]
    %v995 = vld [vmem:[%s1 + $0x280] sm:$0xff]
    %v996 = vld [vmem:[%s1 + $0x288] sm:$0xff]
    %v997 = vld [vmem:[%s1 + $0x290] sm:$0xff]
    %v998 = vld [vmem:[%s1 + $0x298] sm:$0xff]
    %v999 = vld [vmem:[%s1 + $0x2a0] sm:$0xff]
    %v1000 = vld [vmem:[%s1 + $0x2a8] sm:$0xff]
    %v1001 = vld [vmem:[%s1 + $0x2b0] sm:$0xff]
    %v1002 = vld [vmem:[%s1 + $0x2b8] sm:$0xff]
    %v1003 = vld [vmem:[%s1 + $0x2c0] sm:$0xff]
    %v1004 = vld [vmem:[%s1 + $0x2c8] sm:$0xff]
    %v1005 = vld [vmem:[%s1 + $0x2d0] sm:$0xff]
    %v1006 = vld [vmem:[%s1 + $0x2d8] sm:$0xff]
    %v1007 = vld [vmem:[%s1 + $0x2e0] sm:$0xff]
    %v1008 = vld [vmem:[%s1 + $0x2e8] sm:$0xff]
    %v1009 = vld [vmem:[%s1 + $0x2f0] sm:$0xff]
    %v1010 = vld [vmem:[%s1 + $0x2f8] sm:$0xff]
    %v1011 = vld [vmem:[%s1 + $0x300] sm:$0xff]
    %v1012 = vld [vmem:[%s1 + $0x308] sm:$0xff]
    %v1013 = vld [vmem:[%s1 + $0x310] sm:$0xff]
    %v1014 = vld [vmem:[%s1 + $0x318] sm:$0xff]
    %v1015 = vld [vmem:[%s1 + $0x320] sm:$0xff]
    %v1016 = vld [vmem:[%s1 + $0x328] sm:$0xff]
    %v1017 = vld [vmem:[%s1 + $0x330] sm:$0xff]
    %v1018 = vld [vmem:[%s1 + $0x338] sm:$0xff]
    %v1019 = vld [vmem:[%s1 + $0x340] sm:$0xff]
    %v1020 = vld [vmem:[%s1 + $0x348] sm:$0xff]
    %v1021 = vld [vmem:[%s1 + $0x350] sm:$0xff]
    %v1022 = vld [vmem:[%s1 + $0x358] sm:$0xff]
    %v1023 = vld [vmem:[%s1 + $0x360] sm:$0xff]
    %v1024 = vld [vmem:[%s1 + $0x368] sm:$0xff]
    %v1025 = vld [vmem:[%s1 + $0x370] sm:$0xff]
    %v1026 = vld [vmem:[%s1 + $0x378] sm:$0xff]
    %v1027 = vld [vmem:[%s1 + $0x380] sm:$0xff]
    %v1028 = vld [vmem:[%s1 + $0x388] sm:$0xff]
    %v1029 = vld [vmem:[%s1 + $0x390] sm:$0xff]
    %v1030 = vld [vmem:[%s1 + $0x398] sm:$0xff]
    %v1031 = vld [vmem:[%s1 + $0x3a0] sm:$0xff]
    %v1032 = vld [vmem:[%s1 + $0x3a8] sm:$0xff]
    %v1033 = vld [vmem:[%s1 + $0x3b0] sm:$0xff]
    %v1034 = vld [vmem:[%s1 + $0x3b8] sm:$0xff]
    %v1035 = vld [vmem:[%s1 + $0x3c0] sm:$0xff]
    %v1036 = vld [vmem:[%s1 + $0x3c8] sm:$0xff]
    %v1037 = vld [vmem:[%s1 + $0x3d0] sm:$0xff]
    %v1038 = vld [vmem:[%s1 + $0x3d8] sm:$0xff]
    %v1039 = vld [vmem:[%s1 + $0x3e0] sm:$0xff]
    %vm1040 = vcmp.eq.s32.totalorder %v915, 4294967295
    %vm1041 = vcmp.eq.s32.totalorder %v916, 4294967295
    %vm1042 = vcmp.eq.s32.totalorder %v917, 4294967295
    %vm1043 = vcmp.eq.s32.totalorder %v918, 4294967295
    %vm1044 = vcmp.eq.s32.totalorder %v919, 4294967295
    %vm1045 = vcmp.eq.s32.totalorder %v920, 4294967295
    %vm1046 = vcmp.eq.s32.totalorder %v921, 4294967295
    %vm1047 = vcmp.eq.s32.totalorder %v922, 4294967295
    %vm1048 = vcmp.eq.s32.totalorder %v923, 4294967295
    %vm1049 = vcmp.eq.s32.totalorder %v924, 4294967295
    %vm1050 = vcmp.eq.s32.totalorder %v925, 4294967295
    %vm1051 = vcmp.eq.s32.totalorder %v926, 4294967295
    %vm1052 = vcmp.eq.s32.totalorder %v927, 4294967295
    %vm1053 = vcmp.eq.s32.totalorder %v928, 4294967295
    %vm1054 = vcmp.eq.s32.totalorder %v929, 4294967295
    %vm1055 = vcmp.eq.s32.totalorder %v930, 4294967295
    %vm1056 = vcmp.eq.s32.totalorder %v931, 4294967295
    %vm1057 = vcmp.eq.s32.totalorder %v932, 4294967295
    %vm1058 = vcmp.eq.s32.totalorder %v933, 4294967295
    %vm1059 = vcmp.eq.s32.totalorder %v934, 4294967295
    %vm1060 = vcmp.eq.s32.totalorder %v935, 4294967295
    %vm1061 = vcmp.eq.s32.totalorder %v936, 4294967295
    %vm1062 = vcmp.eq.s32.totalorder %v937, 4294967295
    %vm1063 = vcmp.eq.s32.totalorder %v938, 4294967295
    %vm1064 = vcmp.eq.s32.totalorder %v939, 4294967295
    %vm1065 = vcmp.eq.s32.totalorder %v940, 4294967295
    %vm1066 = vcmp.eq.s32.totalorder %v941, 4294967295
    %vm1067 = vcmp.eq.s32.totalorder %v942, 4294967295
    %vm1068 = vcmp.eq.s32.totalorder %v943, 4294967295
    %vm1069 = vcmp.eq.s32.totalorder %v944, 4294967295
    %vm1070 = vcmp.eq.s32.totalorder %v945, 4294967295
    %vm1071 = vcmp.eq.s32.totalorder %v946, 4294967295
    %vm1072 = vcmp.eq.s32.totalorder %v947, 4294967295
    %vm1073 = vcmp.eq.s32.totalorder %v948, 4294967295
    %vm1074 = vcmp.eq.s32.totalorder %v949, 4294967295
    %vm1075 = vcmp.eq.s32.totalorder %v950, 4294967295
    %vm1076 = vcmp.eq.s32.totalorder %v951, 4294967295
    %vm1077 = vcmp.eq.s32.totalorder %v952, 4294967295
    %vm1078 = vcmp.eq.s32.totalorder %v953, 4294967295
    %vm1079 = vcmp.eq.s32.totalorder %v954, 4294967295
    %vm1080 = vcmp.eq.s32.totalorder %v955, 4294967295
    %vm1081 = vcmp.eq.s32.totalorder %v956, 4294967295
    %vm1082 = vcmp.eq.s32.totalorder %v957, 4294967295
    %vm1083 = vcmp.eq.s32.totalorder %v958, 4294967295
    %vm1084 = vcmp.eq.s32.totalorder %v959, 4294967295
    %vm1085 = vcmp.eq.s32.totalorder %v960, 4294967295
    %vm1086 = vcmp.eq.s32.totalorder %v961, 4294967295
    %vm1087 = vcmp.eq.s32.totalorder %v962, 4294967295
    %vm1088 = vcmp.eq.s32.totalorder %v963, 4294967295
    %vm1089 = vcmp.eq.s32.totalorder %v964, 4294967295
    %vm1090 = vcmp.eq.s32.totalorder %v965, 4294967295
    %vm1091 = vcmp.eq.s32.totalorder %v966, 4294967295
    %vm1092 = vcmp.eq.s32.totalorder %v967, 4294967295
    %vm1093 = vcmp.eq.s32.totalorder %v968, 4294967295
    %vm1094 = vcmp.eq.s32.totalorder %v969, 4294967295
    %vm1095 = vcmp.eq.s32.totalorder %v970, 4294967295
    %vm1096 = vcmp.eq.s32.totalorder %v971, 4294967295
    %vm1097 = vcmp.eq.s32.totalorder %v972, 4294967295
    %vm1098 = vcmp.eq.s32.totalorder %v973, 4294967295
    %vm1099 = vcmp.eq.s32.totalorder %v974, 4294967295
    %vm1100 = vcmp.eq.s32.totalorder %v975, 4294967295
    %vm1101 = vcmp.eq.s32.totalorder %v976, 4294967295
    %vm1102 = vcmp.eq.s32.totalorder %v977, 4294967295
    %vm1103 = vcmp.eq.s32.totalorder %v978, 4294967295
    %vm1104 = vcmp.eq.s32.totalorder %v979, 4294967295
    %vm1105 = vcmp.eq.s32.totalorder %v980, 4294967295
    %vm1106 = vcmp.eq.s32.totalorder %v981, 4294967295
    %vm1107 = vcmp.eq.s32.totalorder %v982, 4294967295
    %vm1108 = vcmp.eq.s32.totalorder %v983, 4294967295
    %vm1109 = vcmp.eq.s32.totalorder %v984, 4294967295
    %vm1110 = vcmp.eq.s32.totalorder %v985, 4294967295
    %vm1111 = vcmp.eq.s32.totalorder %v986, 4294967295
    %vm1112 = vcmp.eq.s32.totalorder %v987, 4294967295
    %vm1113 = vcmp.eq.s32.totalorder %v988, 4294967295
    %vm1114 = vcmp.eq.s32.totalorder %v989, 4294967295
    %vm1115 = vcmp.eq.s32.totalorder %v990, 4294967295
    %vm1116 = vcmp.eq.s32.totalorder %v991, 4294967295
    %vm1117 = vcmp.eq.s32.totalorder %v992, 4294967295
    %vm1118 = vcmp.eq.s32.totalorder %v993, 4294967295
    %vm1119 = vcmp.eq.s32.totalorder %v994, 4294967295
    %vm1120 = vcmp.eq.s32.totalorder %v995, 4294967295
    %vm1121 = vcmp.eq.s32.totalorder %v996, 4294967295
    %vm1122 = vcmp.eq.s32.totalorder %v997, 4294967295
    %vm1123 = vcmp.eq.s32.totalorder %v998, 4294967295
    %vm1124 = vcmp.eq.s32.totalorder %v999, 4294967295
    %vm1125 = vcmp.eq.s32.totalorder %v1000, 4294967295
    %vm1126 = vcmp.eq.s32.totalorder %v1001, 4294967295
    %vm1127 = vcmp.eq.s32.totalorder %v1002, 4294967295
    %vm1128 = vcmp.eq.s32.totalorder %v1003, 4294967295
    %vm1129 = vcmp.eq.s32.totalorder %v1004, 4294967295
    %vm1130 = vcmp.eq.s32.totalorder %v1005, 4294967295
    %vm1131 = vcmp.eq.s32.totalorder %v1006, 4294967295
    %vm1132 = vcmp.eq.s32.totalorder %v1007, 4294967295
    %vm1133 = vcmp.eq.s32.totalorder %v1008, 4294967295
    %vm1134 = vcmp.eq.s32.totalorder %v1009, 4294967295
    %vm1135 = vcmp.eq.s32.totalorder %v1010, 4294967295
    %vm1136 = vcmp.eq.s32.totalorder %v1011, 4294967295
    %vm1137 = vcmp.eq.s32.totalorder %v1012, 4294967295
    %vm1138 = vcmp.eq.s32.totalorder %v1013, 4294967295
    %vm1139 = vcmp.eq.s32.totalorder %v1014, 4294967295
    %vm1140 = vcmp.eq.s32.totalorder %v1015, 4294967295
    %vm1141 = vcmp.eq.s32.totalorder %v1016, 4294967295
    %vm1142 = vcmp.eq.s32.totalorder %v1017, 4294967295
    %vm1143 = vcmp.eq.s32.totalorder %v1018, 4294967295
    %vm1144 = vcmp.eq.s32.totalorder %v1019, 4294967295
    %vm1145 = vcmp.eq.s32.totalorder %v1020, 4294967295
    %vm1146 = vcmp.eq.s32.totalorder %v1021, 4294967295
    %vm1147 = vcmp.eq.s32.totalorder %v1022, 4294967295
    %vm1148 = vcmp.eq.s32.totalorder %v1023, 4294967295
    %vm1149 = vcmp.eq.s32.totalorder %v1024, 4294967295
    %vm1150 = vcmp.eq.s32.totalorder %v1025, 4294967295
    %vm1151 = vcmp.eq.s32.totalorder %v1026, 4294967295
    %vm1152 = vcmp.eq.s32.totalorder %v1027, 4294967295
    %vm1153 = vcmp.eq.s32.totalorder %v1028, 4294967295
    %vm1154 = vcmp.eq.s32.totalorder %v1029, 4294967295
    %vm1155 = vcmp.eq.s32.totalorder %v1030, 4294967295
    %vm1156 = vcmp.eq.s32.totalorder %v1031, 4294967295
    %vm1157 = vcmp.eq.s32.totalorder %v1032, 4294967295
    %vm1158 = vcmp.eq.s32.totalorder %v1033, 4294967295
    %vm1159 = vcmp.eq.s32.totalorder %v1034, 4294967295
    %vm1160 = vcmp.eq.s32.totalorder %v1035, 4294967295
    %vm1161 = vcmp.eq.s32.totalorder %v1036, 4294967295
    %vm1162 = vcmp.eq.s32.totalorder %v1037, 4294967295
    %vm1163 = vcmp.eq.s32.totalorder %v1038, 4294967295
    %vm1164 = vcmp.eq.s32.totalorder %v1039, 4294967295
    %v1165 = vsel %vm1040, 1, 0
    %v1166 = vsel %vm1041, 1, 0
    %v1167 = vsel %vm1042, 1, 0
    %v1168 = vsel %vm1043, 1, 0
    %v1169 = vsel %vm1044, 1, 0
    %v1170 = vsel %vm1045, 1, 0
    %v1171 = vsel %vm1046, 1, 0
    %v1172 = vsel %vm1047, 1, 0
    %v1173 = vsel %vm1048, 1, 0
    %v1174 = vsel %vm1049, 1, 0
    %v1175 = vsel %vm1050, 1, 0
    %v1176 = vsel %vm1051, 1, 0
    %v1177 = vsel %vm1052, 1, 0
    %v1178 = vsel %vm1053, 1, 0
    %v1179 = vsel %vm1054, 1, 0
    %v1180 = vsel %vm1055, 1, 0
    %v1181 = vsel %vm1056, 1, 0
    %v1182 = vsel %vm1057, 1, 0
    %v1183 = vsel %vm1058, 1, 0
    %v1184 = vsel %vm1059, 1, 0
    %v1185 = vsel %vm1060, 1, 0
    %v1186 = vsel %vm1061, 1, 0
    %v1187 = vsel %vm1062, 1, 0
    %v1188 = vsel %vm1063, 1, 0
    %v1189 = vsel %vm1064, 1, 0
    %v1190 = vsel %vm1065, 1, 0
    %v1191 = vsel %vm1066, 1, 0
    %v1192 = vsel %vm1067, 1, 0
    %v1193 = vsel %vm1068, 1, 0
    %v1194 = vsel %vm1069, 1, 0
    %v1195 = vsel %vm1070, 1, 0
    %v1196 = vsel %vm1071, 1, 0
    %v1197 = vsel %vm1072, 1, 0
    %v1198 = vsel %vm1073, 1, 0
    %v1199 = vsel %vm1074, 1, 0
    %v1200 = vsel %vm1075, 1, 0
    %v1201 = vsel %vm1076, 1, 0
    %v1202 = vsel %vm1077, 1, 0
    %v1203 = vsel %vm1078, 1, 0
    %v1204 = vsel %vm1079, 1, 0
    %v1205 = vsel %vm1080, 1, 0
    %v1206 = vsel %vm1081, 1, 0
    %v1207 = vsel %vm1082, 1, 0
    %v1208 = vsel %vm1083, 1, 0
    %v1209 = vsel %vm1084, 1, 0
    %v1210 = vsel %vm1085, 1, 0
    %v1211 = vsel %vm1086, 1, 0
    %v1212 = vsel %vm1087, 1, 0
    %v1213 = vsel %vm1088, 1, 0
    %v1214 = vsel %vm1089, 1, 0
    %v1215 = vsel %vm1090, 1, 0
    %v1216 = vsel %vm1091, 1, 0
    %v1217 = vsel %vm1092, 1, 0
    %v1218 = vsel %vm1093, 1, 0
    %v1219 = vsel %vm1094, 1, 0
    %v1220 = vsel %vm1095, 1, 0
    %v1221 = vsel %vm1096, 1, 0
    %v1222 = vsel %vm1097, 1, 0
    %v1223 = vsel %vm1098, 1, 0
    %v1224 = vsel %vm1099, 1, 0
    %v1225 = vsel %vm1100, 1, 0
    %v1226 = vsel %vm1101, 1, 0
    %v1227 = vsel %vm1102, 1, 0
    %v1228 = vsel %vm1103, 1, 0
    %v1229 = vsel %vm1104, 1, 0
    %v1230 = vsel %vm1105, 1, 0
    %v1231 = vsel %vm1106, 1, 0
    %v1232 = vsel %vm1107, 1, 0
    %v1233 = vsel %vm1108, 1, 0
    %v1234 = vsel %vm1109, 1, 0
    %v1235 = vsel %vm1110, 1, 0
    %v1236 = vsel %vm1111, 1, 0
    %v1237 = vsel %vm1112, 1, 0
    %v1238 = vsel %vm1113, 1, 0
    %v1239 = vsel %vm1114, 1, 0
    %v1240 = vsel %vm1115, 1, 0
    %v1241 = vsel %vm1116, 1, 0
    %v1242 = vsel %vm1117, 1, 0
    %v1243 = vsel %vm1118, 1, 0
    %v1244 = vsel %vm1119, 1, 0
    %v1245 = vsel %vm1120, 1, 0
    %v1246 = vsel %vm1121, 1, 0
    %v1247 = vsel %vm1122, 1, 0
    %v1248 = vsel %vm1123, 1, 0
    %v1249 = vsel %vm1124, 1, 0
    %v1250 = vsel %vm1125, 1, 0
    %v1251 = vsel %vm1126, 1, 0
    %v1252 = vsel %vm1127, 1, 0
    %v1253 = vsel %vm1128, 1, 0
    %v1254 = vsel %vm1129, 1, 0
    %v1255 = vsel %vm1130, 1, 0
    %v1256 = vsel %vm1131, 1, 0
    %v1257 = vsel %vm1132, 1, 0
    %v1258 = vsel %vm1133, 1, 0
    %v1259 = vsel %vm1134, 1, 0
    %v1260 = vsel %vm1135, 1, 0
    %v1261 = vsel %vm1136, 1, 0
    %v1262 = vsel %vm1137, 1, 0
    %v1263 = vsel %vm1138, 1, 0
    %v1264 = vsel %vm1139, 1, 0
    %v1265 = vsel %vm1140, 1, 0
    %v1266 = vsel %vm1141, 1, 0
    %v1267 = vsel %vm1142, 1, 0
    %v1268 = vsel %vm1143, 1, 0
    %v1269 = vsel %vm1144, 1, 0
    %v1270 = vsel %vm1145, 1, 0
    %v1271 = vsel %vm1146, 1, 0
    %v1272 = vsel %vm1147, 1, 0
    %v1273 = vsel %vm1148, 1, 0
    %v1274 = vsel %vm1149, 1, 0
    %v1275 = vsel %vm1150, 1, 0
    %v1276 = vsel %vm1151, 1, 0
    %v1277 = vsel %vm1152, 1, 0
    %v1278 = vsel %vm1153, 1, 0
    %v1279 = vsel %vm1154, 1, 0
    %v1280 = vsel %vm1155, 1, 0
    %v1281 = vsel %vm1156, 1, 0
    %v1282 = vsel %vm1157, 1, 0
    %v1283 = vsel %vm1158, 1, 0
    %v1284 = vsel %vm1159, 1, 0
    %v1285 = vsel %vm1160, 1, 0
    %v1286 = vsel %vm1161, 1, 0
    %v1287 = vsel %vm1162, 1, 0
    %v1288 = vsel %vm1163, 1, 0
    %v1289 = vsel %vm1164, 1, 0
    %1290 = vset.pattern.permute.xlu0 0
    %1291 = vperm.xlu0 %1290, %v1165
    %v1292 = vpop.permute.xlu0 %1291
    %1293 = vset.pattern.permute.xlu0 0
    %1294 = vperm.xlu0 %1293, %v1166
    %v1295 = vpop.permute.xlu0 %1294
    %1296 = vset.pattern.permute.xlu0 0
    %1297 = vperm.xlu0 %1296, %v1167
    %v1298 = vpop.permute.xlu0 %1297
    %1299 = vset.pattern.permute.xlu0 0
    %1300 = vperm.xlu0 %1299, %v1168
    %v1301 = vpop.permute.xlu0 %1300
    %1302 = vset.pattern.permute.xlu0 0
    %1303 = vperm.xlu0 %1302, %v1169
    %v1304 = vpop.permute.xlu0 %1303
    %1305 = vset.pattern.permute.xlu0 0
    %1306 = vperm.xlu0 %1305, %v1170
    %v1307 = vpop.permute.xlu0 %1306
    %1308 = vset.pattern.permute.xlu0 0
    %1309 = vperm.xlu0 %1308, %v1171
    %v1310 = vpop.permute.xlu0 %1309
    %1311 = vset.pattern.permute.xlu0 0
    %1312 = vperm.xlu0 %1311, %v1172
    %v1313 = vpop.permute.xlu0 %1312
    %1314 = vset.pattern.permute.xlu0 0
    %1315 = vperm.xlu0 %1314, %v1173
    %v1316 = vpop.permute.xlu0 %1315
    %1317 = vset.pattern.permute.xlu0 0
    %1318 = vperm.xlu0 %1317, %v1174
    %v1319 = vpop.permute.xlu0 %1318
    %1320 = vset.pattern.permute.xlu0 0
    %1321 = vperm.xlu0 %1320, %v1175
    %v1322 = vpop.permute.xlu0 %1321
    %1323 = vset.pattern.permute.xlu0 0
    %1324 = vperm.xlu0 %1323, %v1176
    %v1325 = vpop.permute.xlu0 %1324
    %1326 = vset.pattern.permute.xlu0 0
    %1327 = vperm.xlu0 %1326, %v1177
    %v1328 = vpop.permute.xlu0 %1327
    %1329 = vset.pattern.permute.xlu0 0
    %1330 = vperm.xlu0 %1329, %v1178
    %v1331 = vpop.permute.xlu0 %1330
    %1332 = vset.pattern.permute.xlu0 0
    %1333 = vperm.xlu0 %1332, %v1179
    %v1334 = vpop.permute.xlu0 %1333
    %1335 = vset.pattern.permute.xlu0 0
    %1336 = vperm.xlu0 %1335, %v1180
    %v1337 = vpop.permute.xlu0 %1336
    %1338 = vset.pattern.permute.xlu0 0
    %1339 = vperm.xlu0 %1338, %v1181
    %v1340 = vpop.permute.xlu0 %1339
    %1341 = vset.pattern.permute.xlu0 0
    %1342 = vperm.xlu0 %1341, %v1182
    %v1343 = vpop.permute.xlu0 %1342
    %1344 = vset.pattern.permute.xlu0 0
    %1345 = vperm.xlu0 %1344, %v1183
    %v1346 = vpop.permute.xlu0 %1345
    %1347 = vset.pattern.permute.xlu0 0
    %1348 = vperm.xlu0 %1347, %v1184
    %v1349 = vpop.permute.xlu0 %1348
    %1350 = vset.pattern.permute.xlu0 0
    %1351 = vperm.xlu0 %1350, %v1185
    %v1352 = vpop.permute.xlu0 %1351
    %1353 = vset.pattern.permute.xlu0 0
    %1354 = vperm.xlu0 %1353, %v1186
    %v1355 = vpop.permute.xlu0 %1354
    %1356 = vset.pattern.permute.xlu0 0
    %1357 = vperm.xlu0 %1356, %v1187
    %v1358 = vpop.permute.xlu0 %1357
    %1359 = vset.pattern.permute.xlu0 0
    %1360 = vperm.xlu0 %1359, %v1188
    %v1361 = vpop.permute.xlu0 %1360
    %1362 = vset.pattern.permute.xlu0 0
    %1363 = vperm.xlu0 %1362, %v1189
    %v1364 = vpop.permute.xlu0 %1363
    %1365 = vset.pattern.permute.xlu0 0
    %1366 = vperm.xlu0 %1365, %v1190
    %v1367 = vpop.permute.xlu0 %1366
    %1368 = vset.pattern.permute.xlu0 0
    %1369 = vperm.xlu0 %1368, %v1191
    %v1370 = vpop.permute.xlu0 %1369
    %1371 = vset.pattern.permute.xlu0 0
    %1372 = vperm.xlu0 %1371, %v1192
    %v1373 = vpop.permute.xlu0 %1372
    %1374 = vset.pattern.permute.xlu0 0
    %1375 = vperm.xlu0 %1374, %v1193
    %v1376 = vpop.permute.xlu0 %1375
    %1377 = vset.pattern.permute.xlu0 0
    %1378 = vperm.xlu0 %1377, %v1194
    %v1379 = vpop.permute.xlu0 %1378
    %1380 = vset.pattern.permute.xlu0 0
    %1381 = vperm.xlu0 %1380, %v1195
    %v1382 = vpop.permute.xlu0 %1381
    %1383 = vset.pattern.permute.xlu0 0
    %1384 = vperm.xlu0 %1383, %v1196
    %v1385 = vpop.permute.xlu0 %1384
    %1386 = vset.pattern.permute.xlu0 0
    %1387 = vperm.xlu0 %1386, %v1197
    %v1388 = vpop.permute.xlu0 %1387
    %1389 = vset.pattern.permute.xlu0 0
    %1390 = vperm.xlu0 %1389, %v1198
    %v1391 = vpop.permute.xlu0 %1390
    %1392 = vset.pattern.permute.xlu0 0
    %1393 = vperm.xlu0 %1392, %v1199
    %v1394 = vpop.permute.xlu0 %1393
    %1395 = vset.pattern.permute.xlu0 0
    %1396 = vperm.xlu0 %1395, %v1200
    %v1397 = vpop.permute.xlu0 %1396
    %1398 = vset.pattern.permute.xlu0 0
    %1399 = vperm.xlu0 %1398, %v1201
    %v1400 = vpop.permute.xlu0 %1399
    %1401 = vset.pattern.permute.xlu0 0
    %1402 = vperm.xlu0 %1401, %v1202
    %v1403 = vpop.permute.xlu0 %1402
    %1404 = vset.pattern.permute.xlu0 0
    %1405 = vperm.xlu0 %1404, %v1203
    %v1406 = vpop.permute.xlu0 %1405
    %1407 = vset.pattern.permute.xlu0 0
    %1408 = vperm.xlu0 %1407, %v1204
    %v1409 = vpop.permute.xlu0 %1408
    %1410 = vset.pattern.permute.xlu0 0
    %1411 = vperm.xlu0 %1410, %v1205
    %v1412 = vpop.permute.xlu0 %1411
    %1413 = vset.pattern.permute.xlu0 0
    %1414 = vperm.xlu0 %1413, %v1206
    %v1415 = vpop.permute.xlu0 %1414
    %1416 = vset.pattern.permute.xlu0 0
    %1417 = vperm.xlu0 %1416, %v1207
    %v1418 = vpop.permute.xlu0 %1417
    %1419 = vset.pattern.permute.xlu0 0
    %1420 = vperm.xlu0 %1419, %v1208
    %v1421 = vpop.permute.xlu0 %1420
    %1422 = vset.pattern.permute.xlu0 0
    %1423 = vperm.xlu0 %1422, %v1209
    %v1424 = vpop.permute.xlu0 %1423
    %1425 = vset.pattern.permute.xlu0 0
    %1426 = vperm.xlu0 %1425, %v1210
    %v1427 = vpop.permute.xlu0 %1426
    %1428 = vset.pattern.permute.xlu0 0
    %1429 = vperm.xlu0 %1428, %v1211
    %v1430 = vpop.permute.xlu0 %1429
    %1431 = vset.pattern.permute.xlu0 0
    %1432 = vperm.xlu0 %1431, %v1212
    %v1433 = vpop.permute.xlu0 %1432
    %1434 = vset.pattern.permute.xlu0 0
    %1435 = vperm.xlu0 %1434, %v1213
    %v1436 = vpop.permute.xlu0 %1435
    %1437 = vset.pattern.permute.xlu0 0
    %1438 = vperm.xlu0 %1437, %v1214
    %v1439 = vpop.permute.xlu0 %1438
    %1440 = vset.pattern.permute.xlu0 0
    %1441 = vperm.xlu0 %1440, %v1215
    %v1442 = vpop.permute.xlu0 %1441
    %1443 = vset.pattern.permute.xlu0 0
    %1444 = vperm.xlu0 %1443, %v1216
    %v1445 = vpop.permute.xlu0 %1444
    %1446 = vset.pattern.permute.xlu0 0
    %1447 = vperm.xlu0 %1446, %v1217
    %v1448 = vpop.permute.xlu0 %1447
    %1449 = vset.pattern.permute.xlu0 0
    %1450 = vperm.xlu0 %1449, %v1218
    %v1451 = vpop.permute.xlu0 %1450
    %1452 = vset.pattern.permute.xlu0 0
    %1453 = vperm.xlu0 %1452, %v1219
    %v1454 = vpop.permute.xlu0 %1453
    %1455 = vset.pattern.permute.xlu0 0
    %1456 = vperm.xlu0 %1455, %v1220
    %v1457 = vpop.permute.xlu0 %1456
    %1458 = vset.pattern.permute.xlu0 0
    %1459 = vperm.xlu0 %1458, %v1221
    %v1460 = vpop.permute.xlu0 %1459
    %1461 = vset.pattern.permute.xlu0 0
    %1462 = vperm.xlu0 %1461, %v1222
    %v1463 = vpop.permute.xlu0 %1462
    %1464 = vset.pattern.permute.xlu0 0
    %1465 = vperm.xlu0 %1464, %v1223
    %v1466 = vpop.permute.xlu0 %1465
    %1467 = vset.pattern.permute.xlu0 0
    %1468 = vperm.xlu0 %1467, %v1224
    %v1469 = vpop.permute.xlu0 %1468
    %1470 = vset.pattern.permute.xlu0 0
    %1471 = vperm.xlu0 %1470, %v1225
    %v1472 = vpop.permute.xlu0 %1471
    %1473 = vset.pattern.permute.xlu0 0
    %1474 = vperm.xlu0 %1473, %v1226
    %v1475 = vpop.permute.xlu0 %1474
    %1476 = vset.pattern.permute.xlu0 0
    %1477 = vperm.xlu0 %1476, %v1227
    %v1478 = vpop.permute.xlu0 %1477
    %1479 = vset.pattern.permute.xlu0 0
    %1480 = vperm.xlu0 %1479, %v1228
    %v1481 = vpop.permute.xlu0 %1480
    %1482 = vset.pattern.permute.xlu0 0
    %1483 = vperm.xlu0 %1482, %v1229
    %v1484 = vpop.permute.xlu0 %1483
    %1485 = vset.pattern.permute.xlu0 0
    %1486 = vperm.xlu0 %1485, %v1230
    %v1487 = vpop.permute.xlu0 %1486
    %1488 = vset.pattern.permute.xlu0 0
    %1489 = vperm.xlu0 %1488, %v1231
    %v1490 = vpop.permute.xlu0 %1489
    %1491 = vset.pattern.permute.xlu0 0
    %1492 = vperm.xlu0 %1491, %v1232
    %v1493 = vpop.permute.xlu0 %1492
    %1494 = vset.pattern.permute.xlu0 0
    %1495 = vperm.xlu0 %1494, %v1233
    %v1496 = vpop.permute.xlu0 %1495
    %1497 = vset.pattern.permute.xlu0 0
    %1498 = vperm.xlu0 %1497, %v1234
    %v1499 = vpop.permute.xlu0 %1498
    %1500 = vset.pattern.permute.xlu0 0
    %1501 = vperm.xlu0 %1500, %v1235
    %v1502 = vpop.permute.xlu0 %1501
    %1503 = vset.pattern.permute.xlu0 0
    %1504 = vperm.xlu0 %1503, %v1236
    %v1505 = vpop.permute.xlu0 %1504
    %1506 = vset.pattern.permute.xlu0 0
    %1507 = vperm.xlu0 %1506, %v1237
    %v1508 = vpop.permute.xlu0 %1507
    %1509 = vset.pattern.permute.xlu0 0
    %1510 = vperm.xlu0 %1509, %v1238
    %v1511 = vpop.permute.xlu0 %1510
    %1512 = vset.pattern.permute.xlu0 0
    %1513 = vperm.xlu0 %1512, %v1239
    %v1514 = vpop.permute.xlu0 %1513
    %1515 = vset.pattern.permute.xlu0 0
    %1516 = vperm.xlu0 %1515, %v1240
    %v1517 = vpop.permute.xlu0 %1516
    %1518 = vset.pattern.permute.xlu0 0
    %1519 = vperm.xlu0 %1518, %v1241
    %v1520 = vpop.permute.xlu0 %1519
    %1521 = vset.pattern.permute.xlu0 0
    %1522 = vperm.xlu0 %1521, %v1242
    %v1523 = vpop.permute.xlu0 %1522
    %1524 = vset.pattern.permute.xlu0 0
    %1525 = vperm.xlu0 %1524, %v1243
    %v1526 = vpop.permute.xlu0 %1525
    %1527 = vset.pattern.permute.xlu0 0
    %1528 = vperm.xlu0 %1527, %v1244
    %v1529 = vpop.permute.xlu0 %1528
    %1530 = vset.pattern.permute.xlu0 0
    %1531 = vperm.xlu0 %1530, %v1245
    %v1532 = vpop.permute.xlu0 %1531
    %1533 = vset.pattern.permute.xlu0 0
    %1534 = vperm.xlu0 %1533, %v1246
    %v1535 = vpop.permute.xlu0 %1534
    %1536 = vset.pattern.permute.xlu0 0
    %1537 = vperm.xlu0 %1536, %v1247
    %v1538 = vpop.permute.xlu0 %1537
    %1539 = vset.pattern.permute.xlu0 0
    %1540 = vperm.xlu0 %1539, %v1248
    %v1541 = vpop.permute.xlu0 %1540
    %1542 = vset.pattern.permute.xlu0 0
    %1543 = vperm.xlu0 %1542, %v1249
    %v1544 = vpop.permute.xlu0 %1543
    %1545 = vset.pattern.permute.xlu0 0
    %1546 = vperm.xlu0 %1545, %v1250
    %v1547 = vpop.permute.xlu0 %1546
    %1548 = vset.pattern.permute.xlu0 0
    %1549 = vperm.xlu0 %1548, %v1251
    %v1550 = vpop.permute.xlu0 %1549
    %1551 = vset.pattern.permute.xlu0 0
    %1552 = vperm.xlu0 %1551, %v1252
    %v1553 = vpop.permute.xlu0 %1552
    %1554 = vset.pattern.permute.xlu0 0
    %1555 = vperm.xlu0 %1554, %v1253
    %v1556 = vpop.permute.xlu0 %1555
    %1557 = vset.pattern.permute.xlu0 0
    %1558 = vperm.xlu0 %1557, %v1254
    %v1559 = vpop.permute.xlu0 %1558
    %1560 = vset.pattern.permute.xlu0 0
    %1561 = vperm.xlu0 %1560, %v1255
    %v1562 = vpop.permute.xlu0 %1561
    %1563 = vset.pattern.permute.xlu0 0
    %1564 = vperm.xlu0 %1563, %v1256
    %v1565 = vpop.permute.xlu0 %1564
    %1566 = vset.pattern.permute.xlu0 0
    %1567 = vperm.xlu0 %1566, %v1257
    %v1568 = vpop.permute.xlu0 %1567
    %1569 = vset.pattern.permute.xlu0 0
    %1570 = vperm.xlu0 %1569, %v1258
    %v1571 = vpop.permute.xlu0 %1570
    %1572 = vset.pattern.permute.xlu0 0
    %1573 = vperm.xlu0 %1572, %v1259
    %v1574 = vpop.permute.xlu0 %1573
    %1575 = vset.pattern.permute.xlu0 0
    %1576 = vperm.xlu0 %1575, %v1260
    %v1577 = vpop.permute.xlu0 %1576
    %1578 = vset.pattern.permute.xlu0 0
    %1579 = vperm.xlu0 %1578, %v1261
    %v1580 = vpop.permute.xlu0 %1579
    %1581 = vset.pattern.permute.xlu0 0
    %1582 = vperm.xlu0 %1581, %v1262
    %v1583 = vpop.permute.xlu0 %1582
    %1584 = vset.pattern.permute.xlu0 0
    %1585 = vperm.xlu0 %1584, %v1263
    %v1586 = vpop.permute.xlu0 %1585
    %1587 = vset.pattern.permute.xlu0 0
    %1588 = vperm.xlu0 %1587, %v1264
    %v1589 = vpop.permute.xlu0 %1588
    %1590 = vset.pattern.permute.xlu0 0
    %1591 = vperm.xlu0 %1590, %v1265
    %v1592 = vpop.permute.xlu0 %1591
    %1593 = vset.pattern.permute.xlu0 0
    %1594 = vperm.xlu0 %1593, %v1266
    %v1595 = vpop.permute.xlu0 %1594
    %1596 = vset.pattern.permute.xlu0 0
    %1597 = vperm.xlu0 %1596, %v1267
    %v1598 = vpop.permute.xlu0 %1597
    %1599 = vset.pattern.permute.xlu0 0
    %1600 = vperm.xlu0 %1599, %v1268
    %v1601 = vpop.permute.xlu0 %1600
    %1602 = vset.pattern.permute.xlu0 0
    %1603 = vperm.xlu0 %1602, %v1269
    %v1604 = vpop.permute.xlu0 %1603
    %1605 = vset.pattern.permute.xlu0 0
    %1606 = vperm.xlu0 %1605, %v1270
    %v1607 = vpop.permute.xlu0 %1606
    %1608 = vset.pattern.permute.xlu0 0
    %1609 = vperm.xlu0 %1608, %v1271
    %v1610 = vpop.permute.xlu0 %1609
    %1611 = vset.pattern.permute.xlu0 0
    %1612 = vperm.xlu0 %1611, %v1272
    %v1613 = vpop.permute.xlu0 %1612
    %1614 = vset.pattern.permute.xlu0 0
    %1615 = vperm.xlu0 %1614, %v1273
    %v1616 = vpop.permute.xlu0 %1615
    %1617 = vset.pattern.permute.xlu0 0
    %1618 = vperm.xlu0 %1617, %v1274
    %v1619 = vpop.permute.xlu0 %1618
    %1620 = vset.pattern.permute.xlu0 0
    %1621 = vperm.xlu0 %1620, %v1275
    %v1622 = vpop.permute.xlu0 %1621
    %1623 = vset.pattern.permute.xlu0 0
    %1624 = vperm.xlu0 %1623, %v1276
    %v1625 = vpop.permute.xlu0 %1624
    %1626 = vset.pattern.permute.xlu0 0
    %1627 = vperm.xlu0 %1626, %v1277
    %v1628 = vpop.permute.xlu0 %1627
    %1629 = vset.pattern.permute.xlu0 0
    %1630 = vperm.xlu0 %1629, %v1278
    %v1631 = vpop.permute.xlu0 %1630
    %1632 = vset.pattern.permute.xlu0 0
    %1633 = vperm.xlu0 %1632, %v1279
    %v1634 = vpop.permute.xlu0 %1633
    %1635 = vset.pattern.permute.xlu0 0
    %1636 = vperm.xlu0 %1635, %v1280
    %v1637 = vpop.permute.xlu0 %1636
    %1638 = vset.pattern.permute.xlu0 0
    %1639 = vperm.xlu0 %1638, %v1281
    %v1640 = vpop.permute.xlu0 %1639
    %1641 = vset.pattern.permute.xlu0 0
    %1642 = vperm.xlu0 %1641, %v1282
    %v1643 = vpop.permute.xlu0 %1642
    %1644 = vset.pattern.permute.xlu0 0
    %1645 = vperm.xlu0 %1644, %v1283
    %v1646 = vpop.permute.xlu0 %1645
    %1647 = vset.pattern.permute.xlu0 0
    %1648 = vperm.xlu0 %1647, %v1284
    %v1649 = vpop.permute.xlu0 %1648
    %1650 = vset.pattern.permute.xlu0 0
    %1651 = vperm.xlu0 %1650, %v1285
    %v1652 = vpop.permute.xlu0 %1651
    %1653 = vset.pattern.permute.xlu0 0
    %1654 = vperm.xlu0 %1653, %v1286
    %v1655 = vpop.permute.xlu0 %1654
    %1656 = vset.pattern.permute.xlu0 0
    %1657 = vperm.xlu0 %1656, %v1287
    %v1658 = vpop.permute.xlu0 %1657
    %1659 = vset.pattern.permute.xlu0 0
    %1660 = vperm.xlu0 %1659, %v1288
    %v1661 = vpop.permute.xlu0 %1660
    %1662 = vset.pattern.permute.xlu0 0
    %1663 = vperm.xlu0 %1662, %v1289
    %v1664 = vpop.permute.xlu0 %1663
    %vm1665 = vcmp.eq.s32.totalorder %v1292, 1
    %vm1666 = vcmp.eq.s32.totalorder %v1295, 1
    %vm1667 = vcmp.eq.s32.totalorder %v1298, 1
    %vm1668 = vcmp.eq.s32.totalorder %v1301, 1
    %vm1669 = vcmp.eq.s32.totalorder %v1304, 1
    %vm1670 = vcmp.eq.s32.totalorder %v1307, 1
    %vm1671 = vcmp.eq.s32.totalorder %v1310, 1
    %vm1672 = vcmp.eq.s32.totalorder %v1313, 1
    %vm1673 = vcmp.eq.s32.totalorder %v1316, 1
    %vm1674 = vcmp.eq.s32.totalorder %v1319, 1
    %vm1675 = vcmp.eq.s32.totalorder %v1322, 1
    %vm1676 = vcmp.eq.s32.totalorder %v1325, 1
    %vm1677 = vcmp.eq.s32.totalorder %v1328, 1
    %vm1678 = vcmp.eq.s32.totalorder %v1331, 1
    %vm1679 = vcmp.eq.s32.totalorder %v1334, 1
    %vm1680 = vcmp.eq.s32.totalorder %v1337, 1
    %vm1681 = vcmp.eq.s32.totalorder %v1340, 1
    %vm1682 = vcmp.eq.s32.totalorder %v1343, 1
    %vm1683 = vcmp.eq.s32.totalorder %v1346, 1
    %vm1684 = vcmp.eq.s32.totalorder %v1349, 1
    %vm1685 = vcmp.eq.s32.totalorder %v1352, 1
    %vm1686 = vcmp.eq.s32.totalorder %v1355, 1
    %vm1687 = vcmp.eq.s32.totalorder %v1358, 1
    %vm1688 = vcmp.eq.s32.totalorder %v1361, 1
    %vm1689 = vcmp.eq.s32.totalorder %v1364, 1
    %vm1690 = vcmp.eq.s32.totalorder %v1367, 1
    %vm1691 = vcmp.eq.s32.totalorder %v1370, 1
    %vm1692 = vcmp.eq.s32.totalorder %v1373, 1
    %vm1693 = vcmp.eq.s32.totalorder %v1376, 1
    %vm1694 = vcmp.eq.s32.totalorder %v1379, 1
    %vm1695 = vcmp.eq.s32.totalorder %v1382, 1
    %vm1696 = vcmp.eq.s32.totalorder %v1385, 1
    %vm1697 = vcmp.eq.s32.totalorder %v1388, 1
    %vm1698 = vcmp.eq.s32.totalorder %v1391, 1
    %vm1699 = vcmp.eq.s32.totalorder %v1394, 1
    %vm1700 = vcmp.eq.s32.totalorder %v1397, 1
    %vm1701 = vcmp.eq.s32.totalorder %v1400, 1
    %vm1702 = vcmp.eq.s32.totalorder %v1403, 1
    %vm1703 = vcmp.eq.s32.totalorder %v1406, 1
    %vm1704 = vcmp.eq.s32.totalorder %v1409, 1
    %vm1705 = vcmp.eq.s32.totalorder %v1412, 1
    %vm1706 = vcmp.eq.s32.totalorder %v1415, 1
    %vm1707 = vcmp.eq.s32.totalorder %v1418, 1
    %vm1708 = vcmp.eq.s32.totalorder %v1421, 1
    %vm1709 = vcmp.eq.s32.totalorder %v1424, 1
    %vm1710 = vcmp.eq.s32.totalorder %v1427, 1
    %vm1711 = vcmp.eq.s32.totalorder %v1430, 1
    %vm1712 = vcmp.eq.s32.totalorder %v1433, 1
    %vm1713 = vcmp.eq.s32.totalorder %v1436, 1
    %vm1714 = vcmp.eq.s32.totalorder %v1439, 1
    %vm1715 = vcmp.eq.s32.totalorder %v1442, 1
    %vm1716 = vcmp.eq.s32.totalorder %v1445, 1
    %vm1717 = vcmp.eq.s32.totalorder %v1448, 1
    %vm1718 = vcmp.eq.s32.totalorder %v1451, 1
    %vm1719 = vcmp.eq.s32.totalorder %v1454, 1
    %vm1720 = vcmp.eq.s32.totalorder %v1457, 1
    %vm1721 = vcmp.eq.s32.totalorder %v1460, 1
    %vm1722 = vcmp.eq.s32.totalorder %v1463, 1
    %vm1723 = vcmp.eq.s32.totalorder %v1466, 1
    %vm1724 = vcmp.eq.s32.totalorder %v1469, 1
    %vm1725 = vcmp.eq.s32.totalorder %v1472, 1
    %vm1726 = vcmp.eq.s32.totalorder %v1475, 1
    %vm1727 = vcmp.eq.s32.totalorder %v1478, 1
    %vm1728 = vcmp.eq.s32.totalorder %v1481, 1
    %vm1729 = vcmp.eq.s32.totalorder %v1484, 1
    %vm1730 = vcmp.eq.s32.totalorder %v1487, 1
    %vm1731 = vcmp.eq.s32.totalorder %v1490, 1
    %vm1732 = vcmp.eq.s32.totalorder %v1493, 1
    %vm1733 = vcmp.eq.s32.totalorder %v1496, 1
    %vm1734 = vcmp.eq.s32.totalorder %v1499, 1
    %vm1735 = vcmp.eq.s32.totalorder %v1502, 1
    %vm1736 = vcmp.eq.s32.totalorder %v1505, 1
    %vm1737 = vcmp.eq.s32.totalorder %v1508, 1
    %vm1738 = vcmp.eq.s32.totalorder %v1511, 1
    %vm1739 = vcmp.eq.s32.totalorder %v1514, 1
    %vm1740 = vcmp.eq.s32.totalorder %v1517, 1
    %vm1741 = vcmp.eq.s32.totalorder %v1520, 1
    %vm1742 = vcmp.eq.s32.totalorder %v1523, 1
    %vm1743 = vcmp.eq.s32.totalorder %v1526, 1
    %vm1744 = vcmp.eq.s32.totalorder %v1529, 1
    %vm1745 = vcmp.eq.s32.totalorder %v1532, 1
    %vm1746 = vcmp.eq.s32.totalorder %v1535, 1
    %vm1747 = vcmp.eq.s32.totalorder %v1538, 1
    %vm1748 = vcmp.eq.s32.totalorder %v1541, 1
    %vm1749 = vcmp.eq.s32.totalorder %v1544, 1
    %vm1750 = vcmp.eq.s32.totalorder %v1547, 1
    %vm1751 = vcmp.eq.s32.totalorder %v1550, 1
    %vm1752 = vcmp.eq.s32.totalorder %v1553, 1
    %vm1753 = vcmp.eq.s32.totalorder %v1556, 1
    %vm1754 = vcmp.eq.s32.totalorder %v1559, 1
    %vm1755 = vcmp.eq.s32.totalorder %v1562, 1
    %vm1756 = vcmp.eq.s32.totalorder %v1565, 1
    %vm1757 = vcmp.eq.s32.totalorder %v1568, 1
    %vm1758 = vcmp.eq.s32.totalorder %v1571, 1
    %vm1759 = vcmp.eq.s32.totalorder %v1574, 1
    %vm1760 = vcmp.eq.s32.totalorder %v1577, 1
    %vm1761 = vcmp.eq.s32.totalorder %v1580, 1
    %vm1762 = vcmp.eq.s32.totalorder %v1583, 1
    %vm1763 = vcmp.eq.s32.totalorder %v1586, 1
    %vm1764 = vcmp.eq.s32.totalorder %v1589, 1
    %vm1765 = vcmp.eq.s32.totalorder %v1592, 1
    %vm1766 = vcmp.eq.s32.totalorder %v1595, 1
    %vm1767 = vcmp.eq.s32.totalorder %v1598, 1
    %vm1768 = vcmp.eq.s32.totalorder %v1601, 1
    %vm1769 = vcmp.eq.s32.totalorder %v1604, 1
    %vm1770 = vcmp.eq.s32.totalorder %v1607, 1
    %vm1771 = vcmp.eq.s32.totalorder %v1610, 1
    %vm1772 = vcmp.eq.s32.totalorder %v1613, 1
    %vm1773 = vcmp.eq.s32.totalorder %v1616, 1
    %vm1774 = vcmp.eq.s32.totalorder %v1619, 1
    %vm1775 = vcmp.eq.s32.totalorder %v1622, 1
    %vm1776 = vcmp.eq.s32.totalorder %v1625, 1
    %vm1777 = vcmp.eq.s32.totalorder %v1628, 1
    %vm1778 = vcmp.eq.s32.totalorder %v1631, 1
    %vm1779 = vcmp.eq.s32.totalorder %v1634, 1
    %vm1780 = vcmp.eq.s32.totalorder %v1637, 1
    %vm1781 = vcmp.eq.s32.totalorder %v1640, 1
    %vm1782 = vcmp.eq.s32.totalorder %v1643, 1
    %vm1783 = vcmp.eq.s32.totalorder %v1646, 1
    %vm1784 = vcmp.eq.s32.totalorder %v1649, 1
    %vm1785 = vcmp.eq.s32.totalorder %v1652, 1
    %vm1786 = vcmp.eq.s32.totalorder %v1655, 1
    %vm1787 = vcmp.eq.s32.totalorder %v1658, 1
    %vm1788 = vcmp.eq.s32.totalorder %v1661, 1
    %vm1789 = vcmp.eq.s32.totalorder %v1664, 1
    %v1790 = vperm.slane %v145, 1
    %v1791 = vsel %vm1665, %v1790, %v541
    %v1792 = vsel %vm1666, %v1790, %v544
    %v1793 = vsel %vm1667, %v1790, %v547
    %v1794 = vsel %vm1668, %v1790, %v550
    %v1795 = vsel %vm1669, %v1790, %v553
    %v1796 = vsel %vm1670, %v1790, %v556
    %v1797 = vsel %vm1671, %v1790, %v559
    %v1798 = vsel %vm1672, %v1790, %v562
    %v1799 = vsel %vm1673, %v1790, %v565
    %v1800 = vsel %vm1674, %v1790, %v568
    %v1801 = vsel %vm1675, %v1790, %v571
    %v1802 = vsel %vm1676, %v1790, %v574
    %v1803 = vsel %vm1677, %v1790, %v577
    %v1804 = vsel %vm1678, %v1790, %v580
    %v1805 = vsel %vm1679, %v1790, %v583
    %v1806 = vsel %vm1680, %v1790, %v586
    %v1807 = vsel %vm1681, %v1790, %v589
    %v1808 = vsel %vm1682, %v1790, %v592
    %v1809 = vsel %vm1683, %v1790, %v595
    %v1810 = vsel %vm1684, %v1790, %v598
    %v1811 = vsel %vm1685, %v1790, %v601
    %v1812 = vsel %vm1686, %v1790, %v604
    %v1813 = vsel %vm1687, %v1790, %v607
    %v1814 = vsel %vm1688, %v1790, %v610
    %v1815 = vsel %vm1689, %v1790, %v613
    %v1816 = vsel %vm1690, %v1790, %v616
    %v1817 = vsel %vm1691, %v1790, %v619
    %v1818 = vsel %vm1692, %v1790, %v622
    %v1819 = vsel %vm1693, %v1790, %v625
    %v1820 = vsel %vm1694, %v1790, %v628
    %v1821 = vsel %vm1695, %v1790, %v631
    %v1822 = vsel %vm1696, %v1790, %v634
    %v1823 = vsel %vm1697, %v1790, %v637
    %v1824 = vsel %vm1698, %v1790, %v640
    %v1825 = vsel %vm1699, %v1790, %v643
    %v1826 = vsel %vm1700, %v1790, %v646
    %v1827 = vsel %vm1701, %v1790, %v649
    %v1828 = vsel %vm1702, %v1790, %v652
    %v1829 = vsel %vm1703, %v1790, %v655
    %v1830 = vsel %vm1704, %v1790, %v658
    %v1831 = vsel %vm1705, %v1790, %v661
    %v1832 = vsel %vm1706, %v1790, %v664
    %v1833 = vsel %vm1707, %v1790, %v667
    %v1834 = vsel %vm1708, %v1790, %v670
    %v1835 = vsel %vm1709, %v1790, %v673
    %v1836 = vsel %vm1710, %v1790, %v676
    %v1837 = vsel %vm1711, %v1790, %v679
    %v1838 = vsel %vm1712, %v1790, %v682
    %v1839 = vsel %vm1713, %v1790, %v685
    %v1840 = vsel %vm1714, %v1790, %v688
    %v1841 = vsel %vm1715, %v1790, %v691
    %v1842 = vsel %vm1716, %v1790, %v694
    %v1843 = vsel %vm1717, %v1790, %v697
    %v1844 = vsel %vm1718, %v1790, %v700
    %v1845 = vsel %vm1719, %v1790, %v703
    %v1846 = vsel %vm1720, %v1790, %v706
    %v1847 = vsel %vm1721, %v1790, %v709
    %v1848 = vsel %vm1722, %v1790, %v712
    %v1849 = vsel %vm1723, %v1790, %v715
    %v1850 = vsel %vm1724, %v1790, %v718
    %v1851 = vsel %vm1725, %v1790, %v721
    %v1852 = vsel %vm1726, %v1790, %v724
    %v1853 = vsel %vm1727, %v1790, %v727
    %v1854 = vsel %vm1728, %v1790, %v730
    %v1855 = vsel %vm1729, %v1790, %v733
    %v1856 = vsel %vm1730, %v1790, %v736
    %v1857 = vsel %vm1731, %v1790, %v739
    %v1858 = vsel %vm1732, %v1790, %v742
    %v1859 = vsel %vm1733, %v1790, %v745
    %v1860 = vsel %vm1734, %v1790, %v748
    %v1861 = vsel %vm1735, %v1790, %v751
    %v1862 = vsel %vm1736, %v1790, %v754
    %v1863 = vsel %vm1737, %v1790, %v757
    %v1864 = vsel %vm1738, %v1790, %v760
    %v1865 = vsel %vm1739, %v1790, %v763
    %v1866 = vsel %vm1740, %v1790, %v766
    %v1867 = vsel %vm1741, %v1790, %v769
    %v1868 = vsel %vm1742, %v1790, %v772
    %v1869 = vsel %vm1743, %v1790, %v775
    %v1870 = vsel %vm1744, %v1790, %v778
    %v1871 = vsel %vm1745, %v1790, %v781
    %v1872 = vsel %vm1746, %v1790, %v784
    %v1873 = vsel %vm1747, %v1790, %v787
    %v1874 = vsel %vm1748, %v1790, %v790
    %v1875 = vsel %vm1749, %v1790, %v793
    %v1876 = vsel %vm1750, %v1790, %v796
    %v1877 = vsel %vm1751, %v1790, %v799
    %v1878 = vsel %vm1752, %v1790, %v802
    %v1879 = vsel %vm1753, %v1790, %v805
    %v1880 = vsel %vm1754, %v1790, %v808
    %v1881 = vsel %vm1755, %v1790, %v811
    %v1882 = vsel %vm1756, %v1790, %v814
    %v1883 = vsel %vm1757, %v1790, %v817
    %v1884 = vsel %vm1758, %v1790, %v820
    %v1885 = vsel %vm1759, %v1790, %v823
    %v1886 = vsel %vm1760, %v1790, %v826
    %v1887 = vsel %vm1761, %v1790, %v829
    %v1888 = vsel %vm1762, %v1790, %v832
    %v1889 = vsel %vm1763, %v1790, %v835
    %v1890 = vsel %vm1764, %v1790, %v838
    %v1891 = vsel %vm1765, %v1790, %v841
    %v1892 = vsel %vm1766, %v1790, %v844
    %v1893 = vsel %vm1767, %v1790, %v847
    %v1894 = vsel %vm1768, %v1790, %v850
    %v1895 = vsel %vm1769, %v1790, %v853
    %v1896 = vsel %vm1770, %v1790, %v856
    %v1897 = vsel %vm1771, %v1790, %v859
    %v1898 = vsel %vm1772, %v1790, %v862
    %v1899 = vsel %vm1773, %v1790, %v865
    %v1900 = vsel %vm1774, %v1790, %v868
    %v1901 = vsel %vm1775, %v1790, %v871
    %v1902 = vsel %vm1776, %v1790, %v874
    %v1903 = vsel %vm1777, %v1790, %v877
    %v1904 = vsel %vm1778, %v1790, %v880
    %v1905 = vsel %vm1779, %v1790, %v883
    %v1906 = vsel %vm1780, %v1790, %v886
    %v1907 = vsel %vm1781, %v1790, %v889
    %v1908 = vsel %vm1782, %v1790, %v892
    %v1909 = vsel %vm1783, %v1790, %v895
    %v1910 = vsel %vm1784, %v1790, %v898
    %v1911 = vsel %vm1785, %v1790, %v901
    %v1912 = vsel %vm1786, %v1790, %v904
    %v1913 = vsel %vm1787, %v1790, %v907
    %v1914 = vsel %vm1788, %v1790, %v910
    %v1915 = vsel %vm1789, %v1790, %v913
    %1916 = vst [vmem:[#allocation2] sm:$0xff] %v1791
    %1917 = vst [vmem:[#allocation2 + $0x8] sm:$0xff] %v1792
    %1918 = vst [vmem:[#allocation2 + $0x10] sm:$0xff] %v1793
    %1919 = vst [vmem:[#allocation2 + $0x18] sm:$0xff] %v1794
    %1920 = vst [vmem:[#allocation2 + $0x20] sm:$0xff] %v1795
    %1921 = vst [vmem:[#allocation2 + $0x28] sm:$0xff] %v1796
    %1922 = vst [vmem:[#allocation2 + $0x30] sm:$0xff] %v1797
    %1923 = vst [vmem:[#allocation2 + $0x38] sm:$0xff] %v1798
    %1924 = vst [vmem:[#allocation2 + $0x40] sm:$0xff] %v1799
    %1925 = vst [vmem:[#allocation2 + $0x48] sm:$0xff] %v1800
    %1926 = vst [vmem:[#allocation2 + $0x50] sm:$0xff] %v1801
    %1927 = vst [vmem:[#allocation2 + $0x58] sm:$0xff] %v1802
    %1928 = vst [vmem:[#allocation2 + $0x60] sm:$0xff] %v1803
    %1929 = vst [vmem:[#allocation2 + $0x68] sm:$0xff] %v1804
    %1930 = vst [vmem:[#allocation2 + $0x70] sm:$0xff] %v1805
    %1931 = vst [vmem:[#allocation2 + $0x78] sm:$0xff] %v1806
    %1932 = vst [vmem:[#allocation2 + $0x80] sm:$0xff] %v1807
    %1933 = vst [vmem:[#allocation2 + $0x88] sm:$0xff] %v1808
    %1934 = vst [vmem:[#allocation2 + $0x90] sm:$0xff] %v1809
    %1935 = vst [vmem:[#allocation2 + $0x98] sm:$0xff] %v1810
    %1936 = vst [vmem:[#allocation2 + $0xa0] sm:$0xff] %v1811
    %1937 = vst [vmem:[#allocation2 + $0xa8] sm:$0xff] %v1812
    %1938 = vst [vmem:[#allocation2 + $0xb0] sm:$0xff] %v1813
    %1939 = vst [vmem:[#allocation2 + $0xb8] sm:$0xff] %v1814
    %1940 = vst [vmem:[#allocation2 + $0xc0] sm:$0xff] %v1815
    %1941 = vst [vmem:[#allocation2 + $0xc8] sm:$0xff] %v1816
    %1942 = vst [vmem:[#allocation2 + $0xd0] sm:$0xff] %v1817
    %1943 = vst [vmem:[#allocation2 + $0xd8] sm:$0xff] %v1818
    %1944 = vst [vmem:[#allocation2 + $0xe0] sm:$0xff] %v1819
    %1945 = vst [vmem:[#allocation2 + $0xe8] sm:$0xff] %v1820
    %1946 = vst [vmem:[#allocation2 + $0xf0] sm:$0xff] %v1821
    %1947 = vst [vmem:[#allocation2 + $0xf8] sm:$0xff] %v1822
    %1948 = vst [vmem:[#allocation2 + $0x100] sm:$0xff] %v1823
    %1949 = vst [vmem:[#allocation2 + $0x108] sm:$0xff] %v1824
    %1950 = vst [vmem:[#allocation2 + $0x110] sm:$0xff] %v1825
    %1951 = vst [vmem:[#allocation2 + $0x118] sm:$0xff] %v1826
    %1952 = vst [vmem:[#allocation2 + $0x120] sm:$0xff] %v1827
    %1953 = vst [vmem:[#allocation2 + $0x128] sm:$0xff] %v1828
    %1954 = vst [vmem:[#allocation2 + $0x130] sm:$0xff] %v1829
    %1955 = vst [vmem:[#allocation2 + $0x138] sm:$0xff] %v1830
    %1956 = vst [vmem:[#allocation2 + $0x140] sm:$0xff] %v1831
    %1957 = vst [vmem:[#allocation2 + $0x148] sm:$0xff] %v1832
    %1958 = vst [vmem:[#allocation2 + $0x150] sm:$0xff] %v1833
    %1959 = vst [vmem:[#allocation2 + $0x158] sm:$0xff] %v1834
    %1960 = vst [vmem:[#allocation2 + $0x160] sm:$0xff] %v1835
    %1961 = vst [vmem:[#allocation2 + $0x168] sm:$0xff] %v1836
    %1962 = vst [vmem:[#allocation2 + $0x170] sm:$0xff] %v1837
    %1963 = vst [vmem:[#allocation2 + $0x178] sm:$0xff] %v1838
    %1964 = vst [vmem:[#allocation2 + $0x180] sm:$0xff] %v1839
    %1965 = vst [vmem:[#allocation2 + $0x188] sm:$0xff] %v1840
    %1966 = vst [vmem:[#allocation2 + $0x190] sm:$0xff] %v1841
    %1967 = vst [vmem:[#allocation2 + $0x198] sm:$0xff] %v1842
    %1968 = vst [vmem:[#allocation2 + $0x1a0] sm:$0xff] %v1843
    %1969 = vst [vmem:[#allocation2 + $0x1a8] sm:$0xff] %v1844
    %1970 = vst [vmem:[#allocation2 + $0x1b0] sm:$0xff] %v1845
    %1971 = vst [vmem:[#allocation2 + $0x1b8] sm:$0xff] %v1846
    %1972 = vst [vmem:[#allocation2 + $0x1c0] sm:$0xff] %v1847
    %1973 = vst [vmem:[#allocation2 + $0x1c8] sm:$0xff] %v1848
    %1974 = vst [vmem:[#allocation2 + $0x1d0] sm:$0xff] %v1849
    %1975 = vst [vmem:[#allocation2 + $0x1d8] sm:$0xff] %v1850
    %1976 = vst [vmem:[#allocation2 + $0x1e0] sm:$0xff] %v1851
    %1977 = vst [vmem:[#allocation2 + $0x1e8] sm:$0xff] %v1852
    %1978 = vst [vmem:[#allocation2 + $0x1f0] sm:$0xff] %v1853
    %1979 = vst [vmem:[#allocation2 + $0x1f8] sm:$0xff] %v1854
    %1980 = vst [vmem:[#allocation2 + $0x200] sm:$0xff] %v1855
    %1981 = vst [vmem:[#allocation2 + $0x208] sm:$0xff] %v1856
    %1982 = vst [vmem:[#allocation2 + $0x210] sm:$0xff] %v1857
    %1983 = vst [vmem:[#allocation2 + $0x218] sm:$0xff] %v1858
    %1984 = vst [vmem:[#allocation2 + $0x220] sm:$0xff] %v1859
    %1985 = vst [vmem:[#allocation2 + $0x228] sm:$0xff] %v1860
    %1986 = vst [vmem:[#allocation2 + $0x230] sm:$0xff] %v1861
    %1987 = vst [vmem:[#allocation2 + $0x238] sm:$0xff] %v1862
    %1988 = vst [vmem:[#allocation2 + $0x240] sm:$0xff] %v1863
    %1989 = vst [vmem:[#allocation2 + $0x248] sm:$0xff] %v1864
    %1990 = vst [vmem:[#allocation2 + $0x250] sm:$0xff] %v1865
    %1991 = vst [vmem:[#allocation2 + $0x258] sm:$0xff] %v1866
    %1992 = vst [vmem:[#allocation2 + $0x260] sm:$0xff] %v1867
    %1993 = vst [vmem:[#allocation2 + $0x268] sm:$0xff] %v1868
    %1994 = vst [vmem:[#allocation2 + $0x270] sm:$0xff] %v1869
    %1995 = vst [vmem:[#allocation2 + $0x278] sm:$0xff] %v1870
    %1996 = vst [vmem:[#allocation2 + $0x280] sm:$0xff] %v1871
    %1997 = vst [vmem:[#allocation2 + $0x288] sm:$0xff] %v1872
    %1998 = vst [vmem:[#allocation2 + $0x290] sm:$0xff] %v1873
    %1999 = vst [vmem:[#allocation2 + $0x298] sm:$0xff] %v1874
    %2000 = vst [vmem:[#allocation2 + $0x2a0] sm:$0xff] %v1875
    %2001 = vst [vmem:[#allocation2 + $0x2a8] sm:$0xff] %v1876
    %2002 = vst [vmem:[#allocation2 + $0x2b0] sm:$0xff] %v1877
    %2003 = vst [vmem:[#allocation2 + $0x2b8] sm:$0xff] %v1878
    %2004 = vst [vmem:[#allocation2 + $0x2c0] sm:$0xff] %v1879
    %2005 = vst [vmem:[#allocation2 + $0x2c8] sm:$0xff] %v1880
    %2006 = vst [vmem:[#allocation2 + $0x2d0] sm:$0xff] %v1881
    %2007 = vst [vmem:[#allocation2 + $0x2d8] sm:$0xff] %v1882
    %2008 = vst [vmem:[#allocation2 + $0x2e0] sm:$0xff] %v1883
    %2009 = vst [vmem:[#allocation2 + $0x2e8] sm:$0xff] %v1884
    %2010 = vst [vmem:[#allocation2 + $0x2f0] sm:$0xff] %v1885
    %2011 = vst [vmem:[#allocation2 + $0x2f8] sm:$0xff] %v1886
    %2012 = vst [vmem:[#allocation2 + $0x300] sm:$0xff] %v1887
    %2013 = vst [vmem:[#allocation2 + $0x308] sm:$0xff] %v1888
    %2014 = vst [vmem:[#allocation2 + $0x310] sm:$0xff] %v1889
    %2015 = vst [vmem:[#allocation2 + $0x318] sm:$0xff] %v1890
    %2016 = vst [vmem:[#allocation2 + $0x320] sm:$0xff] %v1891
    %2017 = vst [vmem:[#allocation2 + $0x328] sm:$0xff] %v1892
    %2018 = vst [vmem:[#allocation2 + $0x330] sm:$0xff] %v1893
    %2019 = vst [vmem:[#allocation2 + $0x338] sm:$0xff] %v1894
    %2020 = vst [vmem:[#allocation2 + $0x340] sm:$0xff] %v1895
    %2021 = vst [vmem:[#allocation2 + $0x348] sm:$0xff] %v1896
    %2022 = vst [vmem:[#allocation2 + $0x350] sm:$0xff] %v1897
    %2023 = vst [vmem:[#allocation2 + $0x358] sm:$0xff] %v1898
    %2024 = vst [vmem:[#allocation2 + $0x360] sm:$0xff] %v1899
    %2025 = vst [vmem:[#allocation2 + $0x368] sm:$0xff] %v1900
    %2026 = vst [vmem:[#allocation2 + $0x370] sm:$0xff] %v1901
    %2027 = vst [vmem:[#allocation2 + $0x378] sm:$0xff] %v1902
    %2028 = vst [vmem:[#allocation2 + $0x380] sm:$0xff] %v1903
    %2029 = vst [vmem:[#allocation2 + $0x388] sm:$0xff] %v1904
    %2030 = vst [vmem:[#allocation2 + $0x390] sm:$0xff] %v1905
    %2031 = vst [vmem:[#allocation2 + $0x398] sm:$0xff] %v1906
    %2032 = vst [vmem:[#allocation2 + $0x3a0] sm:$0xff] %v1907
    %2033 = vst [vmem:[#allocation2 + $0x3a8] sm:$0xff] %v1908
    %2034 = vst [vmem:[#allocation2 + $0x3b0] sm:$0xff] %v1909
    %2035 = vst [vmem:[#allocation2 + $0x3b8] sm:$0xff] %v1910
    %2036 = vst [vmem:[#allocation2 + $0x3c0] sm:$0xff] %v1911
    %2037 = vst [vmem:[#allocation2 + $0x3c8] sm:$0xff] %v1912
    %2038 = vst [vmem:[#allocation2 + $0x3d0] sm:$0xff] %v1913
    %2039 = vst [vmem:[#allocation2 + $0x3d8] sm:$0xff] %v1914
    %2040 = vst [vmem:[#allocation2 + $0x3e0] sm:$0xff] %v1915
    // Predicated region
    $region18: #{tpu_custom_call.1} parent=1 // pred_check
      _
    $region19: #{tpu_custom_call.1} parent=1 // pred_check_branch
      %2042 = sbr.rel (0) target = $region21
    $region20: #{tpu_custom_call.1} parent=1 // pred_region
      %2044 = vsyncadd [#allocation3], 0
      %s2045 = sshll.u32 [#allocation2], 4
      %s2046 = int_to_ptr.vmem [resolvable:$true] %s2045
      %s2047 = sshll.u32 %s4, 4
      %s2048 = int_to_ptr.hbm [resolvable:$true] %s2047
      %2053 = dma.vmem_to_hbm [thread:$0]  %s2046, 16000, %s2048, [#allocation3], 128, 128, 8
    $region21: #{tpu_custom_call.1} parent=1 // pred_fallthru
      _
    // Predicated region
    $region22: #{tpu_custom_call.1} parent=1 // pred_check
      _
    $region23: #{tpu_custom_call.1} parent=1 // pred_check_branch
      %2055 = sbr.rel (0) target = $region25
    $region24: #{tpu_custom_call.1} parent=1 // pred_region
      %2057 = dma.done [#allocation3], 16000
    $region25: #{tpu_custom_call.1} parent=1 // pred_fallthru
      _
    %2058 = vsyncpa [#allocation3], 1

</llo_original>
